<compile_context>
chip_gen: v5e
topology: v5e:2x2
jax: 0.10.0
libtpu: 0.0.40
codegen_flags: <defaults>
</compile_context>

<pallas_src>
import math
from functools import partial

import jax
import jax.numpy as jnp
from jax import lax
from jax.experimental import pallas as pl
from jax.experimental.pallas import tpu as pltpu


def _round_up(x, m):
    return ((x + m - 1) // m) * m


# ---------------------------------------------------------------------------
# Kernel: one (batch b, query-tile qi) grid step.
# ---------------------------------------------------------------------------
def _cross_attn_kernel(tgt_ref, qpos_ref, mem_ref, kpos_ref,
                       wq_ref, wk_ref, wv_ref, wo_ref,
                       bq_ref, bk_ref, bv_ref, bo_ref,
                       gamma_ref, beta_ref,
                       out_ref, *, nhead, d_model, lk_real, eps, compute_dtype):
    f32 = jnp.float32
    cd = compute_dtype
    Dh = d_model // nhead

    tgt = tgt_ref[...]                                  # (tq, Ep)  f32, padded lanes == 0
    mem = mem_ref[...]                                  # (Lkp, Ep) f32, padded lanes/rows == 0
    q_in = (tgt + qpos_ref[...]).astype(cd)
    k_in = (mem + kpos_ref[...]).astype(cd)
    v_in = mem.astype(cd)

    tq, Ep = tgt.shape
    Lkp = mem.shape[0]

    # Fused, lane-dense projections over ALL heads at once (f32 accumulation).
    # 1/sqrt(Dh) is pre-folded into wq / bq on the host.
    Q = jnp.dot(q_in, wq_ref[...], preferred_element_type=f32) + bq_ref[...]   # (tq, Ep)
    K = jnp.dot(k_in, wk_ref[...], preferred_element_type=f32) + bk_ref[...]   # (Lkp, Ep)
    V = jnp.dot(v_in, wv_ref[...], preferred_element_type=f32) + bv_ref[...]   # (Lkp, Ep)

    # Additive mask for zero-padded memory rows (only emitted if padding exists).
    if Lkp != lk_real:
        kcol = lax.broadcasted_iota(jnp.int32, (1, Lkp), 1)
        col_bias = jnp.where(kcol < lk_real, 0.0, -1e30).astype(f32)
    else:
        col_bias = None

    wo_all = wo_ref[...]                                # (Ep, Ep), rows = concat-head in-dim

    acc = jnp.zeros((tq, Ep), f32)
    # Static unroll over heads; all slices are static.  Score block is only
    # (tq, Lkp) per head (batch is a grid axis, not folded into rows).
    for h in range(nhead):
        sl = slice(h * Dh, (h + 1) * Dh)
        Qh = Q[:, sl].astype(cd)                        # (tq, Dh)
        Kh = K[:, sl].astype(cd)                        # (Lkp, Dh)
        Vh = V[:, sl].astype(cd)                        # (Lkp, Dh)

        # Contract last dims of Q and K (no transpose in kernel).
        s = lax.dot_general(Qh, Kh, (((1,), (1,)), ((), ())),
                            preferred_element_type=f32)                        # (tq, Lkp)
        if col_bias is not None:
            s = s + col_bias

        m = jnp.max(s, axis=-1, keepdims=True)
        p = jnp.exp(s - m)
        denom = jnp.sum(p, axis=-1, keepdims=True)
        # Normalize AFTER P@V: scale the (tq, Dh) context, not the (tq, Lkp) probs.
        ctx = jnp.dot(p.astype(cd), Vh, preferred_element_type=f32)            # (tq, Dh)
        ctx = ctx * pl.reciprocal(denom, approx=True)                          # EUP slot
        # Fold the output projection per head -> MXU accumulation replaces concat.
        acc = acc + jnp.dot(ctx.astype(cd), wo_all[sl, :],
                            preferred_element_type=f32)                        # (tq, Ep)

    # Residual + out-proj bias.  Padded lanes of tgt / acc / bo are all zero.
    x = tgt + acc + bo_ref[...]

    # LayerNorm over the real d_model lanes (biased variance, PyTorch eps).
    lane = lax.broadcasted_iota(jnp.int32, (1, Ep), 1)
    real = lane < d_model
    inv_e = 1.0 / d_model
    mu = jnp.sum(x, axis=-1, keepdims=True) * inv_e       # padded lanes contribute 0
    xc = jnp.where(real, x - mu, 0.0)
    var = jnp.sum(xc * xc, axis=-1, keepdims=True) * inv_e
    y = xc * lax.rsqrt(var + eps)
    out_ref[...] = y * gamma_ref[...] + beta_ref[...]     # gamma/beta zero-padded


# ---------------------------------------------------------------------------
# One-time weight prepacking (hoisted out of the per-call path).
# ---------------------------------------------------------------------------
def prepack_params(params, *, nhead, compute_dtype=jnp.bfloat16):
    E = params["wq"].shape[0]
    assert E % nhead == 0
    Dh = E // nhead
    Ep = _round_up(E, 128)
    scale = 1.0 / math.sqrt(Dh)

    def pad2(w):                                        # (E, E) -> (Ep, Ep)
        return jnp.pad(w, ((0, Ep - E), (0, Ep - E)))

    def pad_row(b):                                     # (E,) -> (1, Ep)
        return jnp.pad(b.reshape(1, E), ((0, 0), (0, Ep - E)))

    return {
        # (in, out)-oriented, zero-padded, MXU-input dtype; 1/sqrt(Dh) folded into Q.
        "wq": pad2(params["wq"].T * scale).astype(compute_dtype),
        "wk": pad2(params["wk"].T).astype(compute_dtype),
        "wv": pad2(params["wv"].T).astype(compute_dtype),
        "wo": pad2(params["wo"].T).astype(compute_dtype),
        "bq": (pad_row(params["bq"]) * scale).astype(jnp.float32),
        "bk": pad_row(params["bk"]).astype(jnp.float32),
        "bv": pad_row(params["bv"]).astype(jnp.float32),
        "bo": pad_row(params["bo"]).astype(jnp.float32),
        "ln_w": pad_row(params["ln_w"]).astype(jnp.float32),
        "ln_b": pad_row(params["ln_b"]).astype(jnp.float32),
        "nhead": nhead,
        "d_model": E,
        "compute_dtype": compute_dtype,
    }


# ---------------------------------------------------------------------------
# Wrapper.
# ---------------------------------------------------------------------------
def cross_attention_layer(tgt, memory, query_pos, pos, packed, *,
                          eps=1e-5, tile_q=128):
    """tgt/query_pos: (Lq, B, E); memory/pos: (Lk, B, E) — PyTorch seq-major."""
    Lq, B, E = tgt.shape
    Lk = memory.shape[0]
    assert E == packed["d_model"]
    nhead = packed["nhead"]
    cd = packed["compute_dtype"]
    Ep = packed["wq"].shape[0]

    tile_q = min(tile_q, _round_up(Lq, 8))
    Lq_pad = _round_up(Lq, tile_q)
    Lk_pad = _round_up(Lk, 8)
    nq = Lq_pad // tile_q

    # (L, B, E) -> batch-major (B, L_pad, Ep); zero padding on rows / lanes.
    def to_bme(x, L, Lp):
        x = jnp.transpose(x, (1, 0, 2)).astype(jnp.float32)
        return jnp.pad(x, ((0, 0), (0, Lp - L), (0, Ep - E)))

    tgt_b = to_bme(tgt, Lq, Lq_pad)
    qpos_b = to_bme(query_pos, Lq, Lq_pad)
    mem_b = to_bme(memory, Lk, Lk_pad)
    kpos_b = to_bme(pos, Lk, Lk_pad)

    # TODO(synk): memory_mask / memory_key_padding_mask (None in this path) would be
    # folded in as an additional in-kernel additive bias on the score block.

    # Query-tile blocks stream along the inner grid axis; memory blocks depend only
    # on the batch index (re-used across query tiles); parameter blocks are constant.
    q_act = pl.BlockSpec((None, tile_q, Ep), lambda b, qi: (b, qi, 0))
    k_act = pl.BlockSpec((None, Lk_pad, Ep), lambda b, qi: (b, 0, 0))
    w_spec = pl.BlockSpec((Ep, Ep), lambda b, qi: (0, 0))
    r_spec = pl.BlockSpec((1, Ep), lambda b, qi: (0, 0))

    # Advisory cost estimate for the XLA scheduler.
    proj_flops = 2 * B * nq * (tile_q + 2 * Lk_pad) * Ep * Ep
    attn_flops = 4 * B * Lq_pad * Lk_pad * E
    outp_flops = 2 * B * Lq_pad * E * Ep
    param_bytes = sum(int(packed[k].size) * packed[k].dtype.itemsize
                      for k in ("wq", "wk", "wv", "wo", "bq", "bk", "bv",
                                "bo", "ln_w", "ln_b"))
    bytes_accessed = int(4 * (tgt_b.size + qpos_b.size + mem_b.size + kpos_b.size)
                         + param_bytes + 4 * B * Lq_pad * Ep)
    cost = pl.CostEstimate(flops=int(proj_flops + attn_flops + outp_flops),
                           transcendentals=int(B * nhead * Lq_pad * Lk_pad),
                           bytes_accessed=bytes_accessed)

    kernel = partial(_cross_attn_kernel, nhead=nhead, d_model=E, lk_real=Lk,
                     eps=eps, compute_dtype=cd)

    out = pl.pallas_call(
        kernel,
        out_shape=jax.ShapeDtypeStruct((B, Lq_pad, Ep), jnp.float32),
        grid=(B, nq),
        in_specs=[q_act, q_act, k_act, k_act,
                  w_spec, w_spec, w_spec, w_spec,
                  r_spec, r_spec, r_spec, r_spec, r_spec, r_spec],
        out_specs=pl.BlockSpec((None, tile_q, Ep), lambda b, qi: (b, qi, 0)),
        compiler_params=pltpu.CompilerParams(
            dimension_semantics=("parallel", "parallel"),
            vmem_limit_bytes=48 * 1024 * 1024),
        cost_estimate=cost,
    )(tgt_b, qpos_b, mem_b, kpos_b,
      packed["wq"], packed["wk"], packed["wv"], packed["wo"],
      packed["bq"], packed["bk"], packed["bv"], packed["bo"],
      packed["ln_w"], packed["ln_b"])

    # (B, Lq_pad, Ep) -> (Lq, B, E)
    return jnp.transpose(out[:, :Lq, :E], (1, 0, 2))


# ---------------------------------------------------------------------------
# Parameter init (mirrors PyTorch xavier_uniform on in_proj / out_proj).
# ---------------------------------------------------------------------------
def _xavier_uniform(key, shape):
    fan_out, fan_in = shape
    bound = math.sqrt(6.0 / (fan_in + fan_out))
    return jax.random.uniform(key, shape, jnp.float32, -bound, bound)


def init_params(key, d_model):
    E = d_model
    k1, k2 = jax.random.split(key, 2)
    in_proj = _xavier_uniform(k1, (3 * E, E))           # PyTorch in_proj_weight (3E, E)
    wo = _xavier_uniform(k2, (E, E))
    return {
        "wq": in_proj[0 * E:1 * E],
        "wk": in_proj[1 * E:2 * E],
        "wv": in_proj[2 * E:3 * E],
        "bq": jnp.zeros((E,), jnp.float32),
        "bk": jnp.zeros((E,), jnp.float32),
        "bv": jnp.zeros((E,), jnp.float32),
        "wo": wo,
        "bo": jnp.zeros((E,), jnp.float32),
        "ln_w": jnp.ones((E,), jnp.float32),
        "ln_b": jnp.zeros((E,), jnp.float32),
    }


def _reference(tgt, memory, query_pos, pos, params, nhead, eps=1e-5):
    """Pure-JAX reference mirroring PyTorch MultiheadAttention + LayerNorm."""
    Lq, B, E = tgt.shape
    Lk = memory.shape[0]
    Dh = E // nhead
    q_in = tgt + query_pos
    k_in = memory + pos
    Q = jnp.einsum("lbe,fe->lbf", q_in, params["wq"]) + params["bq"]
    K = jnp.einsum("lbe,fe->lbf", k_in, params["wk"]) + params["bk"]
    V = jnp.einsum("lbe,fe->lbf", memory, params["wv"]) + params["bv"]
    Qh = Q.reshape(Lq, B, nhead, Dh)
    Kh = K.reshape(Lk, B, nhead, Dh)
    Vh = V.reshape(Lk, B, nhead, Dh)
    scores = jnp.einsum("qbhd,kbhd->bhqk", Qh, Kh) / math.sqrt(Dh)
    p = jax.nn.softmax(scores, axis=-1)
    ctx = jnp.einsum("bhqk,kbhd->qbhd", p, Vh).reshape(Lq, B, E)
    attn_out = jnp.einsum("lbe,fe->lbf", ctx, params["wo"]) + params["bo"]
    x = tgt + attn_out
    mu = jnp.mean(x, axis=-1, keepdims=True)
    var = jnp.mean((x - mu) ** 2, axis=-1, keepdims=True)
    return (x - mu) / jnp.sqrt(var + eps) * params["ln_w"] + params["ln_b"]


if __name__ == "__main__":
    d_model, nhead = 32, 4
    B, Lq, Lk = 2, 8, 16

    key = jax.random.PRNGKey(0)
    kp, kt, km, kq, kk = jax.random.split(key, 5)
    params = init_params(kp, d_model)

    tgt = jax.random.normal(kt, (Lq, B, d_model), jnp.float32)
    memory = jax.random.normal(km, (Lk, B, d_model), jnp.float32)
    query_pos = jax.random.normal(kq, (Lq, B, d_model), jnp.float32)
    pos = jax.random.normal(kk, (Lk, B, d_model), jnp.float32)

    ref = _reference(tgt, memory, query_pos, pos, params, nhead)

    # f32 MXU-input path: tight check (tolerance reflects pl.reciprocal(approx=True)).
    packed_f32 = prepack_params(params, nhead=nhead, compute_dtype=jnp.float32)
    out_f32 = jax.block_until_ready(
        cross_attention_layer(tgt, memory, query_pos, pos, packed_f32))
    assert out_f32.shape == (Lq, B, d_model)
    assert jnp.allclose(out_f32, ref, atol=2e-3, rtol=2e-3), "f32 mismatch vs reference"

    # Default bf16 MXU-input path (v6e/v7x): f32 accumulation / softmax / LayerNorm.
    packed_bf16 = prepack_params(params, nhead=nhead)       # bf16 by default
    out_bf16 = jax.block_until_ready(
        cross_attention_layer(tgt, memory, query_pos, pos, packed_bf16))
    assert out_bf16.shape == (Lq, B, d_model)
    assert bool(jnp.all(jnp.isfinite(out_bf16)))
    assert float(jnp.max(jnp.abs(out_bf16 - ref))) < 0.2

    print("KERNEL_OK")
</pallas_src>

<mosaic_0001>
module attributes {stable_mosaic.version = 11 : i64} {
  func.func @_cross_attn_kernel(%arg0: i32, %arg1: i32, %arg2: memref<1x8x128xf32, #tpu.memory_space<vmem>>, %arg3: memref<1x8x128xf32, #tpu.memory_space<vmem>>, %arg4: memref<1x16x128xf32, #tpu.memory_space<vmem>>, %arg5: memref<1x16x128xf32, #tpu.memory_space<vmem>>, %arg6: memref<128x128xf32, #tpu.memory_space<vmem>>, %arg7: memref<128x128xf32, #tpu.memory_space<vmem>>, %arg8: memref<128x128xf32, #tpu.memory_space<vmem>>, %arg9: memref<128x128xf32, #tpu.memory_space<vmem>>, %arg10: memref<1x128xf32, #tpu.memory_space<vmem>>, %arg11: memref<1x128xf32, #tpu.memory_space<vmem>>, %arg12: memref<1x128xf32, #tpu.memory_space<vmem>>, %arg13: memref<1x128xf32, #tpu.memory_space<vmem>>, %arg14: memref<1x128xf32, #tpu.memory_space<vmem>>, %arg15: memref<1x128xf32, #tpu.memory_space<vmem>>, %arg16: memref<1x8x128xf32, #tpu.memory_space<vmem>>) attributes {dimension_semantics = [#tpu.dimension_semantics<parallel>, #tpu.dimension_semantics<parallel>], iteration_bounds = array<i64: 2, 1>, scalar_prefetch = 0 : i64, scratch_operands = 0 : i64, tpu.core_type = #tpu.core_type<tc>, window_params = [{transform_indices = @transform_0, window_bounds = array<i64: 1, 8, 128>}, {transform_indices = @transform_1, window_bounds = array<i64: 1, 8, 128>}, {transform_indices = @transform_2, window_bounds = array<i64: 1, 16, 128>}, {transform_indices = @transform_3, window_bounds = array<i64: 1, 16, 128>}, {pipeline_mode = #tpu.pipeline_mode<synchronous>, transform_indices = @transform_4, window_bounds = array<i64: 128, 128>}, {pipeline_mode = #tpu.pipeline_mode<synchronous>, transform_indices = @transform_5, window_bounds = array<i64: 128, 128>}, {pipeline_mode = #tpu.pipeline_mode<synchronous>, transform_indices = @transform_6, window_bounds = array<i64: 128, 128>}, {pipeline_mode = #tpu.pipeline_mode<synchronous>, transform_indices = @transform_7, window_bounds = array<i64: 128, 128>}, {pipeline_mode = #tpu.pipeline_mode<synchronous>, transform_indices = @transform_8, window_bounds = array<i64: 1, 128>}, {pipeline_mode = #tpu.pipeline_mode<synchronous>, transform_indices = @transform_9, window_bounds = array<i64: 1, 128>}, {pipeline_mode = #tpu.pipeline_mode<synchronous>, transform_indices = @transform_10, window_bounds = array<i64: 1, 128>}, {pipeline_mode = #tpu.pipeline_mode<synchronous>, transform_indices = @transform_11, window_bounds = array<i64: 1, 128>}, {pipeline_mode = #tpu.pipeline_mode<synchronous>, transform_indices = @transform_12, window_bounds = array<i64: 1, 128>}, {pipeline_mode = #tpu.pipeline_mode<synchronous>, transform_indices = @transform_13, window_bounds = array<i64: 1, 128>}, {transform_indices = @transform_14, window_bounds = array<i64: 1, 8, 128>}]} {
    %c0 = arith.constant 0 : index
    %c0_0 = arith.constant 0 : index
    %c0_1 = arith.constant 0 : index
    %0 = vector.load %arg2[%c0, %c0_0, %c0_1] : memref<1x8x128xf32, #tpu.memory_space<vmem>>, vector<1x8x128xf32>
    %1 = vector.shape_cast %0 : vector<1x8x128xf32> to vector<8x128xf32>
    %c0_2 = arith.constant 0 : index
    %c0_3 = arith.constant 0 : index
    %c0_4 = arith.constant 0 : index
    %2 = vector.load %arg4[%c0_2, %c0_3, %c0_4] : memref<1x16x128xf32, #tpu.memory_space<vmem>>, vector<1x16x128xf32>
    %3 = vector.shape_cast %2 : vector<1x16x128xf32> to vector<16x128xf32>
    %c0_5 = arith.constant 0 : index
    %c0_6 = arith.constant 0 : index
    %c0_7 = arith.constant 0 : index
    %4 = vector.load %arg3[%c0_5, %c0_6, %c0_7] : memref<1x8x128xf32, #tpu.memory_space<vmem>>, vector<1x8x128xf32>
    %5 = vector.shape_cast %4 : vector<1x8x128xf32> to vector<8x128xf32>
    %6 = arith.addf %1, %5 : vector<8x128xf32>
    %c0_8 = arith.constant 0 : index
    %c0_9 = arith.constant 0 : index
    %c0_10 = arith.constant 0 : index
    %7 = vector.load %arg5[%c0_8, %c0_9, %c0_10] : memref<1x16x128xf32, #tpu.memory_space<vmem>>, vector<1x16x128xf32>
    %8 = vector.shape_cast %7 : vector<1x16x128xf32> to vector<16x128xf32>
    %9 = arith.addf %3, %8 : vector<16x128xf32>
    %c0_11 = arith.constant 0 : index
    %c0_12 = arith.constant 0 : index
    %10 = vector.load %arg6[%c0_11, %c0_12] : memref<128x128xf32, #tpu.memory_space<vmem>>, vector<128x128xf32>
    %cst = arith.constant dense<0.000000e+00> : vector<8x128xf32>
    %11 = tpu.matmul %6, %10, %cst {dimension_numbers = #tpu.dot_dimension_numbers<[1], [0], [0], [1], [0, 0, 1, 1], [], []>} : vector<8x128xf32>, vector<128x128xf32>, vector<8x128xf32> -> vector<8x128xf32>
    %c0_13 = arith.constant 0 : index
    %c0_14 = arith.constant 0 : index
    %12 = vector.load %arg10[%c0_13, %c0_14] : memref<1x128xf32, #tpu.memory_space<vmem>>, vector<1x128xf32>
    %13 = vector.broadcast %12 : vector<1x128xf32> to vector<8x128xf32>
    %14 = arith.addf %11, %13 : vector<8x128xf32>
    %c0_15 = arith.constant 0 : index
    %c0_16 = arith.constant 0 : index
    %15 = vector.load %arg7[%c0_15, %c0_16] : memref<128x128xf32, #tpu.memory_space<vmem>>, vector<128x128xf32>
    %cst_17 = arith.constant dense<0.000000e+00> : vector<16x128xf32>
    %16 = tpu.matmul %9, %15, %cst_17 {dimension_numbers = #tpu.dot_dimension_numbers<[1], [0], [0], [1], [0, 0, 1, 1], [], []>} : vector<16x128xf32>, vector<128x128xf32>, vector<16x128xf32> -> vector<16x128xf32>
    %c0_18 = arith.constant 0 : index
    %c0_19 = arith.constant 0 : index
    %17 = vector.load %arg11[%c0_18, %c0_19] : memref<1x128xf32, #tpu.memory_space<vmem>>, vector<1x128xf32>
    %18 = vector.broadcast %17 : vector<1x128xf32> to vector<16x128xf32>
    %19 = arith.addf %16, %18 : vector<16x128xf32>
    %c0_20 = arith.constant 0 : index
    %c0_21 = arith.constant 0 : index
    %20 = vector.load %arg8[%c0_20, %c0_21] : memref<128x128xf32, #tpu.memory_space<vmem>>, vector<128x128xf32>
    %cst_22 = arith.constant dense<0.000000e+00> : vector<16x128xf32>
    %21 = tpu.matmul %3, %20, %cst_22 {dimension_numbers = #tpu.dot_dimension_numbers<[1], [0], [0], [1], [0, 0, 1, 1], [], []>} : vector<16x128xf32>, vector<128x128xf32>, vector<16x128xf32> -> vector<16x128xf32>
    %c0_23 = arith.constant 0 : index
    %c0_24 = arith.constant 0 : index
    %22 = vector.load %arg12[%c0_23, %c0_24] : memref<1x128xf32, #tpu.memory_space<vmem>>, vector<1x128xf32>
    %23 = vector.broadcast %22 : vector<1x128xf32> to vector<16x128xf32>
    %24 = arith.addf %21, %23 : vector<16x128xf32>
    %c0_25 = arith.constant 0 : index
    %c0_26 = arith.constant 0 : index
    %25 = vector.load %arg9[%c0_25, %c0_26] : memref<128x128xf32, #tpu.memory_space<vmem>>, vector<128x128xf32>
    %cst_27 = arith.constant 0.000000e+00 : f32
    %26 = vector.broadcast %cst_27 : f32 to vector<8x128xf32>
    %27 = vector.extract_strided_slice %14 {offsets = [0, 0], sizes = [8, 8], strides = [1, 1]} : vector<8x128xf32> to vector<8x8xf32>
    %28 = vector.extract_strided_slice %19 {offsets = [0, 0], sizes = [16, 8], strides = [1, 1]} : vector<16x128xf32> to vector<16x8xf32>
    %29 = vector.extract_strided_slice %24 {offsets = [0, 0], sizes = [16, 8], strides = [1, 1]} : vector<16x128xf32> to vector<16x8xf32>
    %cst_28 = arith.constant dense<0.000000e+00> : vector<8x16xf32>
    %30 = tpu.matmul %27, %28, %cst_28 {dimension_numbers = #tpu.dot_dimension_numbers<[1], [1], [0], [0], [0, 0, 1, 0], [], []>} : vector<8x8xf32>, vector<16x8xf32>, vector<8x16xf32> -> vector<8x16xf32>
    %cst_29 = arith.constant dense<0xFF800000> : vector<8xf32>
    %31 = vector.multi_reduction <maximumf>, %30, %cst_29 [1] : vector<8x16xf32> to vector<8xf32>
    %32 = vector.shape_cast %31 : vector<8xf32> to vector<8x1xf32>
    %33 = vector.broadcast %32 : vector<8x1xf32> to vector<8x16xf32>
    %34 = arith.subf %30, %33 : vector<8x16xf32>
    %35 = math.exp %34 : vector<8x16xf32>
    %cst_30 = arith.constant dense<0.000000e+00> : vector<8xf32>
    %36 = vector.multi_reduction <add>, %35, %cst_30 [1] : vector<8x16xf32> to vector<8xf32>
    %37 = vector.shape_cast %36 : vector<8xf32> to vector<8x1xf32>
    %cst_31 = arith.constant dense<0.000000e+00> : vector<8x8xf32>
    %38 = tpu.matmul %35, %29, %cst_31 {dimension_numbers = #tpu.dot_dimension_numbers<[1], [0], [0], [1], [0, 0, 1, 1], [], []>} : vector<8x16xf32>, vector<16x8xf32>, vector<8x8xf32> -> vector<8x8xf32>
    %39 = tpu.reciprocal %37 {approx = true} : vector<8x1xf32> -> vector<8x1xf32>
    %40 = vector.broadcast %39 : vector<8x1xf32> to vector<8x8xf32>
    %41 = arith.mulf %38, %40 : vector<8x8xf32>
    %42 = vector.extract_strided_slice %25 {offsets = [0, 0], sizes = [8, 128], strides = [1, 1]} : vector<128x128xf32> to vector<8x128xf32>
    %cst_32 = arith.constant dense<0.000000e+00> : vector<8x128xf32>
    %43 = tpu.matmul %41, %42, %cst_32 {dimension_numbers = #tpu.dot_dimension_numbers<[1], [0], [0], [1], [0, 0, 1, 1], [], []>} : vector<8x8xf32>, vector<8x128xf32>, vector<8x128xf32> -> vector<8x128xf32>
    %44 = arith.addf %26, %43 : vector<8x128xf32>
    %45 = vector.extract_strided_slice %14 {offsets = [0, 8], sizes = [8, 8], strides = [1, 1]} : vector<8x128xf32> to vector<8x8xf32>
    %46 = vector.extract_strided_slice %19 {offsets = [0, 8], sizes = [16, 8], strides = [1, 1]} : vector<16x128xf32> to vector<16x8xf32>
    %47 = vector.extract_strided_slice %24 {offsets = [0, 8], sizes = [16, 8], strides = [1, 1]} : vector<16x128xf32> to vector<16x8xf32>
    %cst_33 = arith.constant dense<0.000000e+00> : vector<8x16xf32>
    %48 = tpu.matmul %45, %46, %cst_33 {dimension_numbers = #tpu.dot_dimension_numbers<[1], [1], [0], [0], [0, 0, 1, 0], [], []>} : vector<8x8xf32>, vector<16x8xf32>, vector<8x16xf32> -> vector<8x16xf32>
    %cst_34 = arith.constant dense<0xFF800000> : vector<8xf32>
    %49 = vector.multi_reduction <maximumf>, %48, %cst_34 [1] : vector<8x16xf32> to vector<8xf32>
    %50 = vector.shape_cast %49 : vector<8xf32> to vector<8x1xf32>
    %51 = vector.broadcast %50 : vector<8x1xf32> to vector<8x16xf32>
    %52 = arith.subf %48, %51 : vector<8x16xf32>
    %53 = math.exp %52 : vector<8x16xf32>
    %cst_35 = arith.constant dense<0.000000e+00> : vector<8xf32>
    %54 = vector.multi_reduction <add>, %53, %cst_35 [1] : vector<8x16xf32> to vector<8xf32>
    %55 = vector.shape_cast %54 : vector<8xf32> to vector<8x1xf32>
    %cst_36 = arith.constant dense<0.000000e+00> : vector<8x8xf32>
    %56 = tpu.matmul %53, %47, %cst_36 {dimension_numbers = #tpu.dot_dimension_numbers<[1], [0], [0], [1], [0, 0, 1, 1], [], []>} : vector<8x16xf32>, vector<16x8xf32>, vector<8x8xf32> -> vector<8x8xf32>
    %57 = tpu.reciprocal %55 {approx = true} : vector<8x1xf32> -> vector<8x1xf32>
    %58 = vector.broadcast %57 : vector<8x1xf32> to vector<8x8xf32>
    %59 = arith.mulf %56, %58 : vector<8x8xf32>
    %60 = vector.extract_strided_slice %25 {offsets = [8, 0], sizes = [8, 128], strides = [1, 1]} : vector<128x128xf32> to vector<8x128xf32>
    %cst_37 = arith.constant dense<0.000000e+00> : vector<8x128xf32>
    %61 = tpu.matmul %59, %60, %cst_37 {dimension_numbers = #tpu.dot_dimension_numbers<[1], [0], [0], [1], [0, 0, 1, 1], [], []>} : vector<8x8xf32>, vector<8x128xf32>, vector<8x128xf32> -> vector<8x128xf32>
    %62 = arith.addf %44, %61 : vector<8x128xf32>
    %63 = vector.extract_strided_slice %14 {offsets = [0, 16], sizes = [8, 8], strides = [1, 1]} : vector<8x128xf32> to vector<8x8xf32>
    %64 = vector.extract_strided_slice %19 {offsets = [0, 16], sizes = [16, 8], strides = [1, 1]} : vector<16x128xf32> to vector<16x8xf32>
    %65 = vector.extract_strided_slice %24 {offsets = [0, 16], sizes = [16, 8], strides = [1, 1]} : vector<16x128xf32> to vector<16x8xf32>
    %cst_38 = arith.constant dense<0.000000e+00> : vector<8x16xf32>
    %66 = tpu.matmul %63, %64, %cst_38 {dimension_numbers = #tpu.dot_dimension_numbers<[1], [1], [0], [0], [0, 0, 1, 0], [], []>} : vector<8x8xf32>, vector<16x8xf32>, vector<8x16xf32> -> vector<8x16xf32>
    %cst_39 = arith.constant dense<0xFF800000> : vector<8xf32>
    %67 = vector.multi_reduction <maximumf>, %66, %cst_39 [1] : vector<8x16xf32> to vector<8xf32>
    %68 = vector.shape_cast %67 : vector<8xf32> to vector<8x1xf32>
    %69 = vector.broadcast %68 : vector<8x1xf32> to vector<8x16xf32>
    %70 = arith.subf %66, %69 : vector<8x16xf32>
    %71 = math.exp %70 : vector<8x16xf32>
    %cst_40 = arith.constant dense<0.000000e+00> : vector<8xf32>
    %72 = vector.multi_reduction <add>, %71, %cst_40 [1] : vector<8x16xf32> to vector<8xf32>
    %73 = vector.shape_cast %72 : vector<8xf32> to vector<8x1xf32>
    %cst_41 = arith.constant dense<0.000000e+00> : vector<8x8xf32>
    %74 = tpu.matmul %71, %65, %cst_41 {dimension_numbers = #tpu.dot_dimension_numbers<[1], [0], [0], [1], [0, 0, 1, 1], [], []>} : vector<8x16xf32>, vector<16x8xf32>, vector<8x8xf32> -> vector<8x8xf32>
    %75 = tpu.reciprocal %73 {approx = true} : vector<8x1xf32> -> vector<8x1xf32>
    %76 = vector.broadcast %75 : vector<8x1xf32> to vector<8x8xf32>
    %77 = arith.mulf %74, %76 : vector<8x8xf32>
    %78 = vector.extract_strided_slice %25 {offsets = [16, 0], sizes = [8, 128], strides = [1, 1]} : vector<128x128xf32> to vector<8x128xf32>
    %cst_42 = arith.constant dense<0.000000e+00> : vector<8x128xf32>
    %79 = tpu.matmul %77, %78, %cst_42 {dimension_numbers = #tpu.dot_dimension_numbers<[1], [0], [0], [1], [0, 0, 1, 1], [], []>} : vector<8x8xf32>, vector<8x128xf32>, vector<8x128xf32> -> vector<8x128xf32>
    %80 = arith.addf %62, %79 : vector<8x128xf32>
    %81 = vector.extract_strided_slice %14 {offsets = [0, 24], sizes = [8, 8], strides = [1, 1]} : vector<8x128xf32> to vector<8x8xf32>
    %82 = vector.extract_strided_slice %19 {offsets = [0, 24], sizes = [16, 8], strides = [1, 1]} : vector<16x128xf32> to vector<16x8xf32>
    %83 = vector.extract_strided_slice %24 {offsets = [0, 24], sizes = [16, 8], strides = [1, 1]} : vector<16x128xf32> to vector<16x8xf32>
    %cst_43 = arith.constant dense<0.000000e+00> : vector<8x16xf32>
    %84 = tpu.matmul %81, %82, %cst_43 {dimension_numbers = #tpu.dot_dimension_numbers<[1], [1], [0], [0], [0, 0, 1, 0], [], []>} : vector<8x8xf32>, vector<16x8xf32>, vector<8x16xf32> -> vector<8x16xf32>
    %cst_44 = arith.constant dense<0xFF800000> : vector<8xf32>
    %85 = vector.multi_reduction <maximumf>, %84, %cst_44 [1] : vector<8x16xf32> to vector<8xf32>
    %86 = vector.shape_cast %85 : vector<8xf32> to vector<8x1xf32>
    %87 = vector.broadcast %86 : vector<8x1xf32> to vector<8x16xf32>
    %88 = arith.subf %84, %87 : vector<8x16xf32>
    %89 = math.exp %88 : vector<8x16xf32>
    %cst_45 = arith.constant dense<0.000000e+00> : vector<8xf32>
    %90 = vector.multi_reduction <add>, %89, %cst_45 [1] : vector<8x16xf32> to vector<8xf32>
    %91 = vector.shape_cast %90 : vector<8xf32> to vector<8x1xf32>
    %cst_46 = arith.constant dense<0.000000e+00> : vector<8x8xf32>
    %92 = tpu.matmul %89, %83, %cst_46 {dimension_numbers = #tpu.dot_dimension_numbers<[1], [0], [0], [1], [0, 0, 1, 1], [], []>} : vector<8x16xf32>, vector<16x8xf32>, vector<8x8xf32> -> vector<8x8xf32>
    %93 = tpu.reciprocal %91 {approx = true} : vector<8x1xf32> -> vector<8x1xf32>
    %94 = vector.broadcast %93 : vector<8x1xf32> to vector<8x8xf32>
    %95 = arith.mulf %92, %94 : vector<8x8xf32>
    %96 = vector.extract_strided_slice %25 {offsets = [24, 0], sizes = [8, 128], strides = [1, 1]} : vector<128x128xf32> to vector<8x128xf32>
    %cst_47 = arith.constant dense<0.000000e+00> : vector<8x128xf32>
    %97 = tpu.matmul %95, %96, %cst_47 {dimension_numbers = #tpu.dot_dimension_numbers<[1], [0], [0], [1], [0, 0, 1, 1], [], []>} : vector<8x8xf32>, vector<8x128xf32>, vector<8x128xf32> -> vector<8x128xf32>
    %98 = arith.addf %80, %97 : vector<8x128xf32>
    %99 = arith.addf %1, %98 : vector<8x128xf32>
    %c0_48 = arith.constant 0 : index
    %c0_49 = arith.constant 0 : index
    %100 = vector.load %arg13[%c0_48, %c0_49] : memref<1x128xf32, #tpu.memory_space<vmem>>, vector<1x128xf32>
    %101 = vector.broadcast %100 : vector<1x128xf32> to vector<8x128xf32>
    %102 = arith.addf %99, %101 : vector<8x128xf32>
    %103 = tpu.iota {dimensions = array<i32: 1>} : vector<1x128xi32>
    %c32_i32 = arith.constant 32 : i32
    %104 = vector.broadcast %c32_i32 : i32 to vector<1x128xi32>
    %105 = arith.cmpi slt, %103, %104 : vector<1x128xi32>
    %cst_50 = arith.constant dense<0.000000e+00> : vector<8xf32>
    %106 = vector.multi_reduction <add>, %102, %cst_50 [1] : vector<8x128xf32> to vector<8xf32>
    %107 = vector.shape_cast %106 : vector<8xf32> to vector<8x1xf32>
    %cst_51 = arith.constant 3.125000e-02 : f32
    %108 = vector.broadcast %cst_51 : f32 to vector<8x1xf32>
    %109 = arith.mulf %107, %108 : vector<8x1xf32>
    %110 = vector.broadcast %109 : vector<8x1xf32> to vector<8x128xf32>
    %111 = arith.subf %102, %110 : vector<8x128xf32>
    %cst_52 = arith.constant 0.000000e+00 : f32
    %112 = vector.shape_cast %105 : vector<1x128xi1> to vector<1x128xi1>
    %113 = vector.broadcast %112 : vector<1x128xi1> to vector<8x128xi1>
    %114 = vector.broadcast %cst_52 : f32 to vector<8x128xf32>
    %115 = arith.select %113, %111, %114 : vector<8x128xi1>, vector<8x128xf32>
    %116 = arith.mulf %115, %115 : vector<8x128xf32>
    %cst_53 = arith.constant dense<0.000000e+00> : vector<8xf32>
    %117 = vector.multi_reduction <add>, %116, %cst_53 [1] : vector<8x128xf32> to vector<8xf32>
    %118 = vector.shape_cast %117 : vector<8xf32> to vector<8x1xf32>
    %cst_54 = arith.constant 3.125000e-02 : f32
    %119 = vector.broadcast %cst_54 : f32 to vector<8x1xf32>
    %120 = arith.mulf %118, %119 : vector<8x1xf32>
    %cst_55 = arith.constant 9.99999974E-6 : f32
    %121 = vector.broadcast %cst_55 : f32 to vector<8x1xf32>
    %122 = arith.addf %120, %121 : vector<8x1xf32>
    %123 = math.rsqrt %122 : vector<8x1xf32>
    %124 = vector.broadcast %123 : vector<8x1xf32> to vector<8x128xf32>
    %125 = arith.mulf %115, %124 : vector<8x128xf32>
    %c0_56 = arith.constant 0 : index
    %c0_57 = arith.constant 0 : index
    %126 = vector.load %arg14[%c0_56, %c0_57] : memref<1x128xf32, #tpu.memory_space<vmem>>, vector<1x128xf32>
    %127 = vector.broadcast %126 : vector<1x128xf32> to vector<8x128xf32>
    %128 = arith.mulf %125, %127 : vector<8x128xf32>
    %c0_58 = arith.constant 0 : index
    %c0_59 = arith.constant 0 : index
    %129 = vector.load %arg15[%c0_58, %c0_59] : memref<1x128xf32, #tpu.memory_space<vmem>>, vector<1x128xf32>
    %130 = vector.broadcast %129 : vector<1x128xf32> to vector<8x128xf32>
    %131 = arith.addf %128, %130 : vector<8x128xf32>
    %c0_60 = arith.constant 0 : index
    %c0_61 = arith.constant 0 : index
    %c0_62 = arith.constant 0 : index
    %132 = vector.load %arg16[%c0_60, %c0_61, %c0_62] : memref<1x8x128xf32, #tpu.memory_space<vmem>>, vector<1x8x128xf32>
    %133 = vector.shape_cast %132 : vector<1x8x128xf32> to vector<8x128xf32>
    %134 = vector.shape_cast %131 : vector<8x128xf32> to vector<1x8x128xf32>
    tpu.vector_store %arg16[%c0_60, %c0_61, %c0_62], %134 {strides = array<i32>} : memref<1x8x128xf32, #tpu.memory_space<vmem>>, vector<1x8x128xf32>,
    return
  }
  func.func @transform_0(%arg0: i32, %arg1: i32) -> (i32, i32, i32) {
    %c0_i32 = arith.constant 0 : i32
    %c0_i32_0 = arith.constant 0 : i32
    return %arg0, %arg1, %c0_i32 : i32, i32, i32
  }
  func.func @transform_1(%arg0: i32, %arg1: i32) -> (i32, i32, i32) {
    %c0_i32 = arith.constant 0 : i32
    %c0_i32_0 = arith.constant 0 : i32
    return %arg0, %arg1, %c0_i32 : i32, i32, i32
  }
  func.func @transform_2(%arg0: i32, %arg1: i32) -> (i32, i32, i32) {
    %c0_i32 = arith.constant 0 : i32
    %c0_i32_0 = arith.constant 0 : i32
    %c0_i32_1 = arith.constant 0 : i32
    return %arg0, %c0_i32, %c0_i32_0 : i32, i32, i32
  }
  func.func @transform_3(%arg0: i32, %arg1: i32) -> (i32, i32, i32) {
    %c0_i32 = arith.constant 0 : i32
    %c0_i32_0 = arith.constant 0 : i32
    %c0_i32_1 = arith.constant 0 : i32
    return %arg0, %c0_i32, %c0_i32_0 : i32, i32, i32
  }
  func.func @transform_4(%arg0: i32, %arg1: i32) -> (i32, i32) {
    %c0_i32 = arith.constant 0 : i32
    %c0_i32_0 = arith.constant 0 : i32
    %c0_i32_1 = arith.constant 0 : i32
    return %c0_i32, %c0_i32_0 : i32, i32
  }
  func.func @transform_5(%arg0: i32, %arg1: i32) -> (i32, i32) {
    %c0_i32 = arith.constant 0 : i32
    %c0_i32_0 = arith.constant 0 : i32
    %c0_i32_1 = arith.constant 0 : i32
    return %c0_i32, %c0_i32_0 : i32, i32
  }
  func.func @transform_6(%arg0: i32, %arg1: i32) -> (i32, i32) {
    %c0_i32 = arith.constant 0 : i32
    %c0_i32_0 = arith.constant 0 : i32
    %c0_i32_1 = arith.constant 0 : i32
    return %c0_i32, %c0_i32_0 : i32, i32
  }
  func.func @transform_7(%arg0: i32, %arg1: i32) -> (i32, i32) {
    %c0_i32 = arith.constant 0 : i32
    %c0_i32_0 = arith.constant 0 : i32
    %c0_i32_1 = arith.constant 0 : i32
    return %c0_i32, %c0_i32_0 : i32, i32
  }
  func.func @transform_8(%arg0: i32, %arg1: i32) -> (i32, i32) {
    %c0_i32 = arith.constant 0 : i32
    %c0_i32_0 = arith.constant 0 : i32
    %c0_i32_1 = arith.constant 0 : i32
    return %c0_i32, %c0_i32_0 : i32, i32
  }
  func.func @transform_9(%arg0: i32, %arg1: i32) -> (i32, i32) {
    %c0_i32 = arith.constant 0 : i32
    %c0_i32_0 = arith.constant 0 : i32
    %c0_i32_1 = arith.constant 0 : i32
    return %c0_i32, %c0_i32_0 : i32, i32
  }
  func.func @transform_10(%arg0: i32, %arg1: i32) -> (i32, i32) {
    %c0_i32 = arith.constant 0 : i32
    %c0_i32_0 = arith.constant 0 : i32
    %c0_i32_1 = arith.constant 0 : i32
    return %c0_i32, %c0_i32_0 : i32, i32
  }
  func.func @transform_11(%arg0: i32, %arg1: i32) -> (i32, i32) {
    %c0_i32 = arith.constant 0 : i32
    %c0_i32_0 = arith.constant 0 : i32
    %c0_i32_1 = arith.constant 0 : i32
    return %c0_i32, %c0_i32_0 : i32, i32
  }
  func.func @transform_12(%arg0: i32, %arg1: i32) -> (i32, i32) {
    %c0_i32 = arith.constant 0 : i32
    %c0_i32_0 = arith.constant 0 : i32
    %c0_i32_1 = arith.constant 0 : i32
    return %c0_i32, %c0_i32_0 : i32, i32
  }
  func.func @transform_13(%arg0: i32, %arg1: i32) -> (i32, i32) {
    %c0_i32 = arith.constant 0 : i32
    %c0_i32_0 = arith.constant 0 : i32
    %c0_i32_1 = arith.constant 0 : i32
    return %c0_i32, %c0_i32_0 : i32, i32
  }
  func.func @transform_14(%arg0: i32, %arg1: i32) -> (i32, i32, i32) {
    %c0_i32 = arith.constant 0 : i32
    %c0_i32_0 = arith.constant 0 : i32
    return %arg0, %arg1, %c0_i32 : i32, i32, i32
  }
}

</mosaic_0001>

<llo_original>
// kernel: tpu_custom_call.1
$region0: #{tpu_custom_call.1}
  #allocation0 [shape = 'u32[]', space=smem, size = 0x4, offset = 0x4, fixed_abs, tag = 'smem constant byte address 0x4 - core index']
  #allocation1 [shape = 'u32[72,128]{1,0:T(1,128)}', space=vmem, size = 0x9000, scoped, tag = 'internal scratch']
  %s0 = inlined_call_operand.hbm [shape: f32[2,8,128], index: 0, kind: input, shape index: {}]
  %s1 = inlined_call_operand.hbm [shape: f32[2,8,128], index: 1, kind: input, shape index: {}]
  %s2 = inlined_call_operand.hbm [shape: f32[2,16,128], index: 2, kind: input, shape index: {}]
  %s3 = inlined_call_operand.hbm [shape: f32[2,16,128], index: 3, kind: input, shape index: {}]
  %s4 = inlined_call_operand.hbm [shape: f32[128,128], index: 4, kind: input, shape index: {}]
  %s5 = inlined_call_operand.hbm [shape: f32[128,128], index: 5, kind: input, shape index: {}]
  %s6 = inlined_call_operand.hbm [shape: f32[128,128], index: 6, kind: input, shape index: {}]
  %s7 = inlined_call_operand.hbm [shape: f32[128,128], index: 7, kind: input, shape index: {}]
  %s8 = inlined_call_operand.vmem [shape: f32[1,128], index: 8, kind: input, shape index: {}]
  %s9 = inlined_call_operand.vmem [shape: f32[1,128], index: 9, kind: input, shape index: {}]
  %s10 = inlined_call_operand.vmem [shape: f32[1,128], index: 10, kind: input, shape index: {}]
  %s11 = inlined_call_operand.vmem [shape: f32[1,128], index: 11, kind: input, shape index: {}]
  %s12 = inlined_call_operand.vmem [shape: f32[1,128], index: 12, kind: input, shape index: {}]
  %s13 = inlined_call_operand.vmem [shape: f32[1,128], index: 13, kind: input, shape index: {}]
  %s14 = inlined_call_operand.hbm [shape: f32[2,8,128], index: 14, kind: output, shape index: {}]
  %s15 = sld [smem:[#allocation0]]
  $region121: #{tpu_custom_call.1} parent=0
    _
  %s17 = ssub.s32 1, %s15
  %s18 = scalar_select 0, %s17, %s15
  $region1: #{tpu_custom_call.1} parent=0
    #allocation2 [shape = 'u8[8192]{0}', space=vmem, size = 0x2000, scoped, tag = 'input window, operand 0']
    #allocation3 [shape = 's32[2]{0}', space=sflag, size = 0x8, scoped, tag = 'scoped memory for tpu_custom_call.1']
    #allocation4 [shape = 's32[2]{0}', space=sflag, size = 0x8, scoped, tag = 'scoped memory for tpu_custom_call.1']
    #allocation5 [shape = 'u8[8192]{0}', space=vmem, size = 0x2000, scoped, tag = 'input window, operand 1']
    #allocation6 [shape = 's32[2]{0}', space=sflag, size = 0x8, scoped, tag = 'scoped memory for tpu_custom_call.1']
    #allocation7 [shape = 'u8[16384]{0}', space=vmem, size = 0x4000, scoped, tag = 'input window, operand 2']
    #allocation8 [shape = 'u8[16384]{0}', space=vmem, size = 0x4000, scoped, tag = 'input window, operand 3']
    #allocation9 [shape = 's32[2]{0}', space=sflag, size = 0x8, scoped, tag = 'scoped memory for tpu_custom_call.1']
    #allocation10 [shape = 'u8[65536]{0}', space=vmem, size = 0x10000, scoped, tag = 'input window, operand 4, single buffered']
    #allocation11 [shape = 'u8[65536]{0}', space=vmem, size = 0x10000, scoped, tag = 'input window, operand 5, single buffered']
    #allocation12 [shape = 's32[1]{0}', space=sflag, size = 0x4, scoped, tag = 'scoped memory for tpu_custom_call.1']
    #allocation13 [shape = 'u8[65536]{0}', space=vmem, size = 0x10000, scoped, tag = 'input window, operand 6, single buffered']
    #allocation14 [shape = 'u8[65536]{0}', space=vmem, size = 0x10000, scoped, tag = 'input window, operand 7, single buffered']
    #allocation15 [shape = 's32[1]{0}', space=sflag, size = 0x4, scoped, tag = 'scoped memory for tpu_custom_call.1']
    #allocation16 [shape = 'u8[8192]{0}', space=vmem, size = 0x2000, scoped, tag = 'output window, operand 0']
    %19 = vsyncpa [#allocation3], 0
    %s20 = scalar_lea.sflag [#allocation3], 1
    %21 = vsyncpa %s20, 0
    %22 = vsyncpa [#allocation6], 0
    %s23 = scalar_lea.sflag [#allocation6], 1
    %24 = vsyncpa %s23, 0
    %25 = vsyncpa [#allocation9], 0
    %s26 = scalar_lea.sflag [#allocation9], 1
    %27 = vsyncpa %s26, 0
    %28 = vsyncpa [#allocation12], 0
    %29 = vsyncpa [#allocation15], 0
    %30 = vsyncpa [#allocation4], 0
    %s31 = scalar_lea.sflag [#allocation4], 1
    %32 = vsyncpa %s31, 0
    loop: start=0, step=1, limit=4
    $region2: #{tpu_custom_call.1} parent=1 // loop_pre_header
      _
    $region3: #{tpu_custom_call.1} parent=1 // loop_header
      %s34 = sphi 0, %s38
      %p35 = scmp.ge.s32.totalorder %s34, 4
      %s41 = sphi 0, %s53
      %s42 = sphi 0, %s49
      %s43 = sphi 0, %s41
      %s44 = sphi 0, %s42
      %s45 = sphi 0, %s43
      %s46 = sphi 0, %s44
      %s58 = sphi 0, %s60
      %s61 = sphi 0, %s58
      %s62 = sphi 0, %s61
      %s78 = sphi 0, %s62
      %s86 = sphi 0, %s88
      %s89 = sphi 0, %s86
      %s90 = sphi 0, %s89
      %s106 = sphi 0, %s90
      %s112 = sphi 0, %s114
      %s115 = sphi 0, %s112
      %s116 = sphi 0, %s115
      %s132 = sphi 0, %s116
      %s138 = sphi 0, %s140
      %s141 = sphi 0, %s138
      %s142 = sphi 0, %s141
      %s158 = sphi 0, %s142
      %s162 = sphi 0, %s162
      %s164 = sphi 0, %s162
      %s165 = sphi 0, %s164
      %s179 = sphi 0, %s165
      %s183 = sphi 0, %s183
      %s185 = sphi 0, %s183
      %s186 = sphi 0, %s185
      %s200 = sphi 0, %s186
      %s204 = sphi 0, %s204
      %s206 = sphi 0, %s204
      %s207 = sphi 0, %s206
      %s221 = sphi 0, %s207
      %s225 = sphi 0, %s225
      %s227 = sphi 0, %s225
      %s228 = sphi 0, %s227
      %s242 = sphi 0, %s228
      %s246 = sphi 0, %s246
      %s248 = sphi 0, %s246
      %s249 = sphi 0, %s248
      %s263 = sphi 0, %s249
      %s267 = sphi 0, %s267
      %s269 = sphi 0, %s267
      %s270 = sphi 0, %s269
      %s284 = sphi 0, %s270
      %s288 = sphi 0, %s288
      %s290 = sphi 0, %s288
      %s291 = sphi 0, %s290
      %s305 = sphi 0, %s291
      %s309 = sphi 0, %s309
      %s311 = sphi 0, %s309
      %s312 = sphi 0, %s311
      %s326 = sphi 0, %s312
      %s330 = sphi 0, %s330
      %s332 = sphi 0, %s330
      %s333 = sphi 0, %s332
      %s347 = sphi 0, %s333
      %s351 = sphi 0, %s351
      %s353 = sphi 0, %s351
      %s354 = sphi 0, %s353
      %s368 = sphi 0, %s354
      %s376 = sphi 0, %s378
      %s379 = sphi 0, %s376
      %s380 = sphi 0, %s379
      %s396 = sphi 0, %s380
    $region4: #{tpu_custom_call.1} parent=1 // loop_header_branch
      %37 = sbr.rel (%p35) target = $region8
    $region5: #{tpu_custom_call.1} parent=1 // loop_body
      %s39 = ssub.s32 %s34, 1
      %s40 = ssub.s32 %s34, 2
      %s47 = sadd.s32 1, %s42
      %p48 = scmp.ge.s32.totalorder %s47, 1
      %s49 = scalar_select %p48, 0, %s47
      %s50 = sadd.s32 1, %s41
      %s51 = scalar_select %p48, %s50, %s41
      %p52 = scmp.ge.s32.totalorder %s51, 2
      %s53 = scalar_select %p52, 0, %s51
      %s54 = ssub.s32 %s41, %s53
      %s55 = ssub.s32 %s42, %s49
      %s56 = sor.u32 %s54, %s55
      %p57 = scmp.eq.s32.totalorder %s56, 0
      %s59 = sadd.s32 %s58, 1
      %s60 = scalar_select %p57, %s58, %s59
      %p63 = pneg %p57
      %p64 = scmp.eq.s32.totalorder %s34, 1
      %p65 = por %p63, %p64
      %p66 = scmp.ne.s32.totalorder %s58, %s61
      %p67 = scmp.eq.s32.totalorder %s34, 0
      %p68 = por %p66, %p67
      %p69 = scmp.ne.s32.totalorder %s58, %s61
      %p70 = scmp.eq.s32.totalorder %s39, 1
      %p71 = por %p69, %p70
      %p72 = scmp.ne.s32.totalorder %s61, %s62
      %p73 = scmp.eq.s32.totalorder %s39, 0
      %p74 = por %p72, %p73
      %p75 = scmp.ne.s32.totalorder %s61, %s62
      %p76 = scmp.eq.s32.totalorder %s40, 1
      %p77 = por %p75, %p76
      %p79 = scmp.ne.s32.totalorder %s62, %s78
      %p80 = scmp.eq.s32.totalorder %s40, 0
      %p81 = por %p79, %p80
      %s82 = ssub.s32 %s41, %s53
      %s83 = ssub.s32 %s42, %s49
      %s84 = sor.u32 %s82, %s83
      %p85 = scmp.eq.s32.totalorder %s84, 0
      %s87 = sadd.s32 %s86, 1
      %s88 = scalar_select %p85, %s86, %s87
      %p91 = pneg %p85
      %p92 = scmp.eq.s32.totalorder %s34, 1
      %p93 = por %p91, %p92
      %p94 = scmp.ne.s32.totalorder %s86, %s89
      %p95 = scmp.eq.s32.totalorder %s34, 0
      %p96 = por %p94, %p95
      %p97 = scmp.ne.s32.totalorder %s86, %s89
      %p98 = scmp.eq.s32.totalorder %s39, 1
      %p99 = por %p97, %p98
      %p100 = scmp.ne.s32.totalorder %s89, %s90
      %p101 = scmp.eq.s32.totalorder %s39, 0
      %p102 = por %p100, %p101
      %p103 = scmp.ne.s32.totalorder %s89, %s90
      %p104 = scmp.eq.s32.totalorder %s40, 1
      %p105 = por %p103, %p104
      %p107 = scmp.ne.s32.totalorder %s90, %s106
      %p108 = scmp.eq.s32.totalorder %s40, 0
      %p109 = por %p107, %p108
      %s110 = ssub.s32 %s41, %s53
      %p111 = scmp.eq.s32.totalorder %s110, 0
      %s113 = sadd.s32 %s112, 1
      %s114 = scalar_select %p111, %s112, %s113
      %p117 = pneg %p111
      %p118 = scmp.eq.s32.totalorder %s34, 1
      %p119 = por %p117, %p118
      %p120 = scmp.ne.s32.totalorder %s112, %s115
      %p121 = scmp.eq.s32.totalorder %s34, 0
      %p122 = por %p120, %p121
      %p123 = scmp.ne.s32.totalorder %s112, %s115
      %p124 = scmp.eq.s32.totalorder %s39, 1
      %p125 = por %p123, %p124
      %p126 = scmp.ne.s32.totalorder %s115, %s116
      %p127 = scmp.eq.s32.totalorder %s39, 0
      %p128 = por %p126, %p127
      %p129 = scmp.ne.s32.totalorder %s115, %s116
      %p130 = scmp.eq.s32.totalorder %s40, 1
      %p131 = por %p129, %p130
      %p133 = scmp.ne.s32.totalorder %s116, %s132
      %p134 = scmp.eq.s32.totalorder %s40, 0
      %p135 = por %p133, %p134
      %s136 = ssub.s32 %s41, %s53
      %p137 = scmp.eq.s32.totalorder %s136, 0
      %s139 = sadd.s32 %s138, 1
      %s140 = scalar_select %p137, %s138, %s139
      %p143 = pneg %p137
      %p144 = scmp.eq.s32.totalorder %s34, 1
      %p145 = por %p143, %p144
      %p146 = scmp.ne.s32.totalorder %s138, %s141
      %p147 = scmp.eq.s32.totalorder %s34, 0
      %p148 = por %p146, %p147
      %p149 = scmp.ne.s32.totalorder %s138, %s141
      %p150 = scmp.eq.s32.totalorder %s39, 1
      %p151 = por %p149, %p150
      %p152 = scmp.ne.s32.totalorder %s141, %s142
      %p153 = scmp.eq.s32.totalorder %s39, 0
      %p154 = por %p152, %p153
      %p155 = scmp.ne.s32.totalorder %s141, %s142
      %p156 = scmp.eq.s32.totalorder %s40, 1
      %p157 = por %p155, %p156
      %p159 = scmp.ne.s32.totalorder %s142, %s158
      %p160 = scmp.eq.s32.totalorder %s40, 0
      %p161 = por %p159, %p160
      %s163 = sadd.s32 %s162, 1
      %p166 = scmp.eq.s32.totalorder %s34, 1
      %p167 = scmp.ne.s32.totalorder %s162, %s164
      %p168 = scmp.eq.s32.totalorder %s34, 0
      %p169 = por %p167, %p168
      %p170 = scmp.ne.s32.totalorder %s162, %s164
      %p171 = scmp.eq.s32.totalorder %s39, 1
      %p172 = por %p170, %p171
      %p173 = scmp.ne.s32.totalorder %s164, %s165
      %p174 = scmp.eq.s32.totalorder %s39, 0
      %p175 = por %p173, %p174
      %p176 = scmp.ne.s32.totalorder %s164, %s165
      %p177 = scmp.eq.s32.totalorder %s40, 1
      %p178 = por %p176, %p177
      %p180 = scmp.ne.s32.totalorder %s165, %s179
      %p181 = scmp.eq.s32.totalorder %s40, 0
      %p182 = por %p180, %p181
      %s184 = sadd.s32 %s183, 1
      %p187 = scmp.eq.s32.totalorder %s34, 1
      %p188 = scmp.ne.s32.totalorder %s183, %s185
      %p189 = scmp.eq.s32.totalorder %s34, 0
      %p190 = por %p188, %p189
      %p191 = scmp.ne.s32.totalorder %s183, %s185
      %p192 = scmp.eq.s32.totalorder %s39, 1
      %p193 = por %p191, %p192
      %p194 = scmp.ne.s32.totalorder %s185, %s186
      %p195 = scmp.eq.s32.totalorder %s39, 0
      %p196 = por %p194, %p195
      %p197 = scmp.ne.s32.totalorder %s185, %s186
      %p198 = scmp.eq.s32.totalorder %s40, 1
      %p199 = por %p197, %p198
      %p201 = scmp.ne.s32.totalorder %s186, %s200
      %p202 = scmp.eq.s32.totalorder %s40, 0
      %p203 = por %p201, %p202
      %s205 = sadd.s32 %s204, 1
      %p208 = scmp.eq.s32.totalorder %s34, 1
      %p209 = scmp.ne.s32.totalorder %s204, %s206
      %p210 = scmp.eq.s32.totalorder %s34, 0
      %p211 = por %p209, %p210
      %p212 = scmp.ne.s32.totalorder %s204, %s206
      %p213 = scmp.eq.s32.totalorder %s39, 1
      %p214 = por %p212, %p213
      %p215 = scmp.ne.s32.totalorder %s206, %s207
      %p216 = scmp.eq.s32.totalorder %s39, 0
      %p217 = por %p215, %p216
      %p218 = scmp.ne.s32.totalorder %s206, %s207
      %p219 = scmp.eq.s32.totalorder %s40, 1
      %p220 = por %p218, %p219
      %p222 = scmp.ne.s32.totalorder %s207, %s221
      %p223 = scmp.eq.s32.totalorder %s40, 0
      %p224 = por %p222, %p223
      %s226 = sadd.s32 %s225, 1
      %p229 = scmp.eq.s32.totalorder %s34, 1
      %p230 = scmp.ne.s32.totalorder %s225, %s227
      %p231 = scmp.eq.s32.totalorder %s34, 0
      %p232 = por %p230, %p231
      %p233 = scmp.ne.s32.totalorder %s225, %s227
      %p234 = scmp.eq.s32.totalorder %s39, 1
      %p235 = por %p233, %p234
      %p236 = scmp.ne.s32.totalorder %s227, %s228
      %p237 = scmp.eq.s32.totalorder %s39, 0
      %p238 = por %p236, %p237
      %p239 = scmp.ne.s32.totalorder %s227, %s228
      %p240 = scmp.eq.s32.totalorder %s40, 1
      %p241 = por %p239, %p240
      %p243 = scmp.ne.s32.totalorder %s228, %s242
      %p244 = scmp.eq.s32.totalorder %s40, 0
      %p245 = por %p243, %p244
      %s247 = sadd.s32 %s246, 1
      %p250 = scmp.eq.s32.totalorder %s34, 1
      %p251 = scmp.ne.s32.totalorder %s246, %s248
      %p252 = scmp.eq.s32.totalorder %s34, 0
      %p253 = por %p251, %p252
      %p254 = scmp.ne.s32.totalorder %s246, %s248
      %p255 = scmp.eq.s32.totalorder %s39, 1
      %p256 = por %p254, %p255
      %p257 = scmp.ne.s32.totalorder %s248, %s249
      %p258 = scmp.eq.s32.totalorder %s39, 0
      %p259 = por %p257, %p258
      %p260 = scmp.ne.s32.totalorder %s248, %s249
      %p261 = scmp.eq.s32.totalorder %s40, 1
      %p262 = por %p260, %p261
      %p264 = scmp.ne.s32.totalorder %s249, %s263
      %p265 = scmp.eq.s32.totalorder %s40, 0
      %p266 = por %p264, %p265
      %s268 = sadd.s32 %s267, 1
      %p271 = scmp.eq.s32.totalorder %s34, 1
      %p272 = scmp.ne.s32.totalorder %s267, %s269
      %p273 = scmp.eq.s32.totalorder %s34, 0
      %p274 = por %p272, %p273
      %p275 = scmp.ne.s32.totalorder %s267, %s269
      %p276 = scmp.eq.s32.totalorder %s39, 1
      %p277 = por %p275, %p276
      %p278 = scmp.ne.s32.totalorder %s269, %s270
      %p279 = scmp.eq.s32.totalorder %s39, 0
      %p280 = por %p278, %p279
      %p281 = scmp.ne.s32.totalorder %s269, %s270
      %p282 = scmp.eq.s32.totalorder %s40, 1
      %p283 = por %p281, %p282
      %p285 = scmp.ne.s32.totalorder %s270, %s284
      %p286 = scmp.eq.s32.totalorder %s40, 0
      %p287 = por %p285, %p286
      %s289 = sadd.s32 %s288, 1
      %p292 = scmp.eq.s32.totalorder %s34, 1
      %p293 = scmp.ne.s32.totalorder %s288, %s290
      %p294 = scmp.eq.s32.totalorder %s34, 0
      %p295 = por %p293, %p294
      %p296 = scmp.ne.s32.totalorder %s288, %s290
      %p297 = scmp.eq.s32.totalorder %s39, 1
      %p298 = por %p296, %p297
      %p299 = scmp.ne.s32.totalorder %s290, %s291
      %p300 = scmp.eq.s32.totalorder %s39, 0
      %p301 = por %p299, %p300
      %p302 = scmp.ne.s32.totalorder %s290, %s291
      %p303 = scmp.eq.s32.totalorder %s40, 1
      %p304 = por %p302, %p303
      %p306 = scmp.ne.s32.totalorder %s291, %s305
      %p307 = scmp.eq.s32.totalorder %s40, 0
      %p308 = por %p306, %p307
      %s310 = sadd.s32 %s309, 1
      %p313 = scmp.eq.s32.totalorder %s34, 1
      %p314 = scmp.ne.s32.totalorder %s309, %s311
      %p315 = scmp.eq.s32.totalorder %s34, 0
      %p316 = por %p314, %p315
      %p317 = scmp.ne.s32.totalorder %s309, %s311
      %p318 = scmp.eq.s32.totalorder %s39, 1
      %p319 = por %p317, %p318
      %p320 = scmp.ne.s32.totalorder %s311, %s312
      %p321 = scmp.eq.s32.totalorder %s39, 0
      %p322 = por %p320, %p321
      %p323 = scmp.ne.s32.totalorder %s311, %s312
      %p324 = scmp.eq.s32.totalorder %s40, 1
      %p325 = por %p323, %p324
      %p327 = scmp.ne.s32.totalorder %s312, %s326
      %p328 = scmp.eq.s32.totalorder %s40, 0
      %p329 = por %p327, %p328
      %s331 = sadd.s32 %s330, 1
      %p334 = scmp.eq.s32.totalorder %s34, 1
      %p335 = scmp.ne.s32.totalorder %s330, %s332
      %p336 = scmp.eq.s32.totalorder %s34, 0
      %p337 = por %p335, %p336
      %p338 = scmp.ne.s32.totalorder %s330, %s332
      %p339 = scmp.eq.s32.totalorder %s39, 1
      %p340 = por %p338, %p339
      %p341 = scmp.ne.s32.totalorder %s332, %s333
      %p342 = scmp.eq.s32.totalorder %s39, 0
      %p343 = por %p341, %p342
      %p344 = scmp.ne.s32.totalorder %s332, %s333
      %p345 = scmp.eq.s32.totalorder %s40, 1
      %p346 = por %p344, %p345
      %p348 = scmp.ne.s32.totalorder %s333, %s347
      %p349 = scmp.eq.s32.totalorder %s40, 0
      %p350 = por %p348, %p349
      %s352 = sadd.s32 %s351, 1
      %p355 = scmp.eq.s32.totalorder %s34, 1
      %p356 = scmp.ne.s32.totalorder %s351, %s353
      %p357 = scmp.eq.s32.totalorder %s34, 0
      %p358 = por %p356, %p357
      %p359 = scmp.ne.s32.totalorder %s351, %s353
      %p360 = scmp.eq.s32.totalorder %s39, 1
      %p361 = por %p359, %p360
      %p362 = scmp.ne.s32.totalorder %s353, %s354
      %p363 = scmp.eq.s32.totalorder %s39, 0
      %p364 = por %p362, %p363
      %p365 = scmp.ne.s32.totalorder %s353, %s354
      %p366 = scmp.eq.s32.totalorder %s40, 1
      %p367 = por %p365, %p366
      %p369 = scmp.ne.s32.totalorder %s354, %s368
      %p370 = scmp.eq.s32.totalorder %s40, 0
      %p371 = por %p369, %p370
      %s372 = ssub.s32 %s41, %s53
      %s373 = ssub.s32 %s42, %s49
      %s374 = sor.u32 %s372, %s373
      %p375 = scmp.eq.s32.totalorder %s374, 0
      %s377 = sadd.s32 %s376, 1
      %s378 = scalar_select %p375, %s376, %s377
      %p381 = pneg %p375
      %p382 = scmp.eq.s32.totalorder %s34, 1
      %p383 = por %p381, %p382
      %p384 = scmp.ne.s32.totalorder %s376, %s379
      %p385 = scmp.eq.s32.totalorder %s34, 0
      %p386 = por %p384, %p385
      %p387 = scmp.ne.s32.totalorder %s376, %s379
      %p388 = scmp.eq.s32.totalorder %s39, 1
      %p389 = por %p387, %p388
      %p390 = scmp.ne.s32.totalorder %s379, %s380
      %p391 = scmp.eq.s32.totalorder %s39, 0
      %p392 = por %p390, %p391
      %p393 = scmp.ne.s32.totalorder %s379, %s380
      %p394 = scmp.eq.s32.totalorder %s40, 1
      %p395 = por %p393, %p394
      %p397 = scmp.ne.s32.totalorder %s380, %s396
      %p398 = scmp.eq.s32.totalorder %s40, 0
      %p399 = por %p397, %p398
      %p400 = scmp.le.s32.totalorder 1, %s34
      %p401 = scmp.lt.s32.totalorder %s34, 3
      %p402 = pnand %p400, %p401
      %p403 = pneg %p402
      // Predicated region
      $region9: #{tpu_custom_call.1} parent=5 // pred_check
        _
      $region10: #{tpu_custom_call.1} parent=5 // pred_check_branch
        %405 = sbr.rel (%p402) target = $region12
      $region11: #{tpu_custom_call.1} parent=5 // pred_region
        %s406 = ssub.s32 %s34, 1
        // Predicated region
        $region13: #{tpu_custom_call.1} parent=11 // pred_check
          %p407 = pneg %p175
        $region14: #{tpu_custom_call.1} parent=11 // pred_check_branch
          %409 = sbr.rel (%p407) target = $region16
        $region15: #{tpu_custom_call.1} parent=11 // pred_region
          %411 = vsyncadd [#allocation9], 0
          %s412 = sshll.u32 %s4, 4
          %s413 = int_to_ptr.hbm [resolvable:$true] %s412
          %s414 = sshll.u32 [#allocation10], 4
          %s415 = int_to_ptr.vmem [resolvable:$true] %s414
          %420 = dma.hbm_to_vmem [thread:$0]  %s413, 2048, %s415, [#allocation9], 128, 128, 8
        $region16: #{tpu_custom_call.1} parent=11 // pred_fallthru
          _
        // Predicated region
        $region17: #{tpu_custom_call.1} parent=11 // pred_check
          %p421 = pneg %p196
        $region18: #{tpu_custom_call.1} parent=11 // pred_check_branch
          %423 = sbr.rel (%p421) target = $region20
        $region19: #{tpu_custom_call.1} parent=11 // pred_region
          %425 = vsyncadd [#allocation12], 0
          %s426 = sshll.u32 %s5, 4
          %s427 = int_to_ptr.hbm [resolvable:$true] %s426
          %s428 = sshll.u32 [#allocation11], 4
          %s429 = int_to_ptr.vmem [resolvable:$true] %s428
          %434 = dma.hbm_to_vmem [thread:$0]  %s427, 2048, %s429, [#allocation12], 128, 128, 8
        $region20: #{tpu_custom_call.1} parent=11 // pred_fallthru
          _
        // Predicated region
        $region21: #{tpu_custom_call.1} parent=11 // pred_check
          %p435 = pneg %p217
        $region22: #{tpu_custom_call.1} parent=11 // pred_check_branch
          %437 = sbr.rel (%p435) target = $region24
        $region23: #{tpu_custom_call.1} parent=11 // pred_region
          %439 = vsyncadd [#allocation12], 0
          %s440 = sshll.u32 %s6, 4
          %s441 = int_to_ptr.hbm [resolvable:$true] %s440
          %s442 = sshll.u32 [#allocation13], 4
          %s443 = int_to_ptr.vmem [resolvable:$true] %s442
          %448 = dma.hbm_to_vmem [thread:$0]  %s441, 2048, %s443, [#allocation12], 128, 128, 8
        $region24: #{tpu_custom_call.1} parent=11 // pred_fallthru
          _
        // Predicated region
        $region25: #{tpu_custom_call.1} parent=11 // pred_check
          %p449 = pneg %p238
        $region26: #{tpu_custom_call.1} parent=11 // pred_check_branch
          %451 = sbr.rel (%p449) target = $region28
        $region27: #{tpu_custom_call.1} parent=11 // pred_region
          %453 = vsyncadd [#allocation15], 0
          %s454 = sshll.u32 %s7, 4
          %s455 = int_to_ptr.hbm [resolvable:$true] %s454
          %s456 = sshll.u32 [#allocation14], 4
          %s457 = int_to_ptr.vmem [resolvable:$true] %s456
          %462 = dma.hbm_to_vmem [thread:$0]  %s455, 2048, %s457, [#allocation15], 128, 128, 8
        $region28: #{tpu_custom_call.1} parent=11 // pred_fallthru
          _
        // Predicated region
        $region29: #{tpu_custom_call.1} parent=11 // pred_check
          %p463 = pneg %p259
        $region30: #{tpu_custom_call.1} parent=11 // pred_check_branch
          %465 = sbr.rel (%p463) target = $region32
        $region31: #{tpu_custom_call.1} parent=11 // pred_region
          _
        $region32: #{tpu_custom_call.1} parent=11 // pred_fallthru
          _
        // Predicated region
        $region33: #{tpu_custom_call.1} parent=11 // pred_check
          %p466 = pneg %p280
        $region34: #{tpu_custom_call.1} parent=11 // pred_check_branch
          %468 = sbr.rel (%p466) target = $region36
        $region35: #{tpu_custom_call.1} parent=11 // pred_region
          _
        $region36: #{tpu_custom_call.1} parent=11 // pred_fallthru
          _
        // Predicated region
        $region37: #{tpu_custom_call.1} parent=11 // pred_check
          %p469 = pneg %p301
        $region38: #{tpu_custom_call.1} parent=11 // pred_check_branch
          %471 = sbr.rel (%p469) target = $region40
        $region39: #{tpu_custom_call.1} parent=11 // pred_region
          _
        $region40: #{tpu_custom_call.1} parent=11 // pred_fallthru
          _
        // Predicated region
        $region41: #{tpu_custom_call.1} parent=11 // pred_check
          %p472 = pneg %p322
        $region42: #{tpu_custom_call.1} parent=11 // pred_check_branch
          %474 = sbr.rel (%p472) target = $region44
        $region43: #{tpu_custom_call.1} parent=11 // pred_region
          _
        $region44: #{tpu_custom_call.1} parent=11 // pred_fallthru
          _
        // Predicated region
        $region45: #{tpu_custom_call.1} parent=11 // pred_check
          %p475 = pneg %p343
        $region46: #{tpu_custom_call.1} parent=11 // pred_check_branch
          %477 = sbr.rel (%p475) target = $region48
        $region47: #{tpu_custom_call.1} parent=11 // pred_region
          _
        $region48: #{tpu_custom_call.1} parent=11 // pred_fallthru
          _
        // Predicated region
        $region49: #{tpu_custom_call.1} parent=11 // pred_check
          %p478 = pneg %p364
        $region50: #{tpu_custom_call.1} parent=11 // pred_check_branch
          %480 = sbr.rel (%p478) target = $region52
        $region51: #{tpu_custom_call.1} parent=11 // pred_region
          _
        $region52: #{tpu_custom_call.1} parent=11 // pred_fallthru
          _
      $region12: #{tpu_custom_call.1} parent=5 // pred_fallthru
        _
      %p481 = scmp.lt.s32.totalorder %s34, 2
      // Predicated region
      $region53: #{tpu_custom_call.1} parent=5 // pred_check
        %p482 = pneg %p481
      $region54: #{tpu_custom_call.1} parent=5 // pred_check_branch
        %484 = sbr.rel (%p482) target = $region56
      $region55: #{tpu_custom_call.1} parent=5 // pred_region
        // Predicated region
        $region57: #{tpu_custom_call.1} parent=55 // pred_check
          %p485 = pneg %p68
        $region58: #{tpu_custom_call.1} parent=55 // pred_check_branch
          %487 = sbr.rel (%p485) target = $region60
        $region59: #{tpu_custom_call.1} parent=55 // pred_region
          %s488 = sand.u32 %s58, 1
          %s489 = scalar_lea.sflag [#allocation3], %s488
          %s490 = sand.u32 %s58, 1
          %s491 = smul.addr %s490, 8
          %s492 = scalar_lea.vmem [#allocation2], %s491
          %494 = vsyncadd %s489, 0
          %s495 = sadd.s32 %s42, %s41
          %s496 = smul.addr %s495, 8
          %s497 = scalar_lea.hbm %s0, %s496
          %s499 = sshll.u32 %s497, 4
          %s500 = int_to_ptr.hbm [resolvable:$true] %s499
          %s501 = sshll.u32 %s492, 4
          %s502 = int_to_ptr.vmem [resolvable:$true] %s501
          %504 = dma.hbm_to_vmem [thread:$0]  %s500, 128, %s502, %s489
        $region60: #{tpu_custom_call.1} parent=55 // pred_fallthru
          _
        // Predicated region
        $region61: #{tpu_custom_call.1} parent=55 // pred_check
          %p505 = pneg %p96
        $region62: #{tpu_custom_call.1} parent=55 // pred_check_branch
          %507 = sbr.rel (%p505) target = $region64
        $region63: #{tpu_custom_call.1} parent=55 // pred_region
          %s508 = sand.u32 %s34, 1
          %s509 = scalar_lea.sflag [#allocation6], %s508
          %s510 = sand.u32 %s86, 1
          %s511 = smul.addr %s510, 8
          %s512 = scalar_lea.vmem [#allocation5], %s511
          %514 = vsyncadd %s509, 0
          %s515 = sadd.s32 %s42, %s41
          %s516 = smul.addr %s515, 8
          %s517 = scalar_lea.hbm %s1, %s516
          %s519 = sshll.u32 %s517, 4
          %s520 = int_to_ptr.hbm [resolvable:$true] %s519
          %s521 = sshll.u32 %s512, 4
          %s522 = int_to_ptr.vmem [resolvable:$true] %s521
          %524 = dma.hbm_to_vmem [thread:$0]  %s520, 128, %s522, %s509
        $region64: #{tpu_custom_call.1} parent=55 // pred_fallthru
          _
        // Predicated region
        $region65: #{tpu_custom_call.1} parent=55 // pred_check
          %p525 = pneg %p122
        $region66: #{tpu_custom_call.1} parent=55 // pred_check_branch
          %527 = sbr.rel (%p525) target = $region68
        $region67: #{tpu_custom_call.1} parent=55 // pred_region
          %s528 = sand.u32 %s34, 1
          %s529 = scalar_lea.sflag [#allocation6], %s528
          %s530 = sand.u32 %s112, 1
          %s531 = smul.addr %s530, 16
          %s532 = scalar_lea.vmem [#allocation7], %s531
          %534 = vsyncadd %s529, 0
          %s535 = smul.addr %s41, 2
          %s536 = smul.addr %s535, 8
          %s537 = scalar_lea.hbm %s2, %s536
          %s538 = sshll.u32 %s537, 4
          %s539 = int_to_ptr.hbm [resolvable:$true] %s538
          %s540 = sshll.u32 %s532, 4
          %s541 = int_to_ptr.vmem [resolvable:$true] %s540
          %546 = dma.hbm_to_vmem [thread:$0]  %s539, 256, %s541, %s529, 128, 128, 8
        $region68: #{tpu_custom_call.1} parent=55 // pred_fallthru
          _
        // Predicated region
        $region69: #{tpu_custom_call.1} parent=55 // pred_check
          %p547 = pneg %p148
        $region70: #{tpu_custom_call.1} parent=55 // pred_check_branch
          %549 = sbr.rel (%p547) target = $region72
        $region71: #{tpu_custom_call.1} parent=55 // pred_region
          %s550 = sand.u32 %s34, 1
          %s551 = scalar_lea.sflag [#allocation9], %s550
          %s552 = sand.u32 %s138, 1
          %s553 = smul.addr %s552, 16
          %s554 = scalar_lea.vmem [#allocation8], %s553
          %556 = vsyncadd %s551, 0
          %s557 = smul.addr %s41, 2
          %s558 = smul.addr %s557, 8
          %s559 = scalar_lea.hbm %s3, %s558
          %s560 = sshll.u32 %s559, 4
          %s561 = int_to_ptr.hbm [resolvable:$true] %s560
          %s562 = sshll.u32 %s554, 4
          %s563 = int_to_ptr.vmem [resolvable:$true] %s562
          %568 = dma.hbm_to_vmem [thread:$0]  %s561, 256, %s563, %s551, 128, 128, 8
        $region72: #{tpu_custom_call.1} parent=55 // pred_fallthru
          _
      $region56: #{tpu_custom_call.1} parent=5 // pred_fallthru
        _
      %p569 = scmp.le.s32.totalorder 1, %s34
      %p570 = scmp.lt.s32.totalorder %s34, 3
      %p571 = pnand %p569, %p570
      %p572 = pneg %p571
      // Predicated region
      $region73: #{tpu_custom_call.1} parent=5 // pred_check
        _
      $region74: #{tpu_custom_call.1} parent=5 // pred_check_branch
        %574 = sbr.rel (%p571) target = $region76
      $region75: #{tpu_custom_call.1} parent=5 // pred_region
        %s575 = ssub.s32 %s34, 1
        %s576 = sand.u32 %s61, 1
        %s577 = scalar_lea.sflag [#allocation3], %s576
        %s578 = sand.u32 %s61, 1
        %s579 = smul.addr %s578, 8
        %s580 = scalar_lea.vmem [#allocation2], %s579
        // Predicated region
        $region77: #{tpu_custom_call.1} parent=75 // pred_check
          %p581 = pneg %p74
        $region78: #{tpu_custom_call.1} parent=75 // pred_check_branch
          %583 = sbr.rel (%p581) target = $region80
        $region79: #{tpu_custom_call.1} parent=75 // pred_region
          %585 = dma.done %s577, 128
        $region80: #{tpu_custom_call.1} parent=75 // pred_fallthru
          _
        %s586 = sand.u32 %s39, 1
        %s587 = scalar_lea.sflag [#allocation6], %s586
        %s588 = sand.u32 %s89, 1
        %s589 = smul.addr %s588, 8
        %s590 = scalar_lea.vmem [#allocation5], %s589
        // Predicated region
        $region81: #{tpu_custom_call.1} parent=75 // pred_check
          %p591 = pneg %p102
        $region82: #{tpu_custom_call.1} parent=75 // pred_check_branch
          %593 = sbr.rel (%p591) target = $region84
        $region83: #{tpu_custom_call.1} parent=75 // pred_region
          %595 = dma.done %s587, 128
        $region84: #{tpu_custom_call.1} parent=75 // pred_fallthru
          _
        %s596 = sand.u32 %s39, 1
        %s597 = scalar_lea.sflag [#allocation6], %s596
        %s598 = sand.u32 %s115, 1
        %s599 = smul.addr %s598, 16
        %s600 = scalar_lea.vmem [#allocation7], %s599
        // Predicated region
        $region85: #{tpu_custom_call.1} parent=75 // pred_check
          %p601 = pneg %p128
        $region86: #{tpu_custom_call.1} parent=75 // pred_check_branch
          %603 = sbr.rel (%p601) target = $region88
        $region87: #{tpu_custom_call.1} parent=75 // pred_region
          %605 = dma.done %s597, 256
        $region88: #{tpu_custom_call.1} parent=75 // pred_fallthru
          _
        %s606 = sand.u32 %s39, 1
        %s607 = scalar_lea.sflag [#allocation9], %s606
        %s608 = sand.u32 %s141, 1
        %s609 = smul.addr %s608, 16
        %s610 = scalar_lea.vmem [#allocation8], %s609
        // Predicated region
        $region89: #{tpu_custom_call.1} parent=75 // pred_check
          %p611 = pneg %p154
        $region90: #{tpu_custom_call.1} parent=75 // pred_check_branch
          %613 = sbr.rel (%p611) target = $region92
        $region91: #{tpu_custom_call.1} parent=75 // pred_region
          %615 = dma.done %s607, 256
        $region92: #{tpu_custom_call.1} parent=75 // pred_fallthru
          _
        // Predicated region
        $region93: #{tpu_custom_call.1} parent=75 // pred_check
          %p616 = pneg %p175
        $region94: #{tpu_custom_call.1} parent=75 // pred_check_branch
          %618 = sbr.rel (%p616) target = $region96
        $region95: #{tpu_custom_call.1} parent=75 // pred_region
          %620 = dma.done [#allocation9], 2048
        $region96: #{tpu_custom_call.1} parent=75 // pred_fallthru
          _
        // Predicated region
        $region97: #{tpu_custom_call.1} parent=75 // pred_check
          %p621 = pneg %p196
        $region98: #{tpu_custom_call.1} parent=75 // pred_check_branch
          %623 = sbr.rel (%p621) target = $region100
        $region99: #{tpu_custom_call.1} parent=75 // pred_region
          %625 = dma.done [#allocation12], 2048
        $region100: #{tpu_custom_call.1} parent=75 // pred_fallthru
          _
        // Predicated region
        $region101: #{tpu_custom_call.1} parent=75 // pred_check
          %p626 = pneg %p217
        $region102: #{tpu_custom_call.1} parent=75 // pred_check_branch
          %628 = sbr.rel (%p626) target = $region104
        $region103: #{tpu_custom_call.1} parent=75 // pred_region
          %630 = dma.done [#allocation12], 2048
        $region104: #{tpu_custom_call.1} parent=75 // pred_fallthru
          _
        // Predicated region
        $region105: #{tpu_custom_call.1} parent=75 // pred_check
          %p631 = pneg %p238
        $region106: #{tpu_custom_call.1} parent=75 // pred_check_branch
          %633 = sbr.rel (%p631) target = $region108
        $region107: #{tpu_custom_call.1} parent=75 // pred_region
          %635 = dma.done [#allocation15], 2048
        $region108: #{tpu_custom_call.1} parent=75 // pred_fallthru
          _
        %s636 = sand.u32 %s61, 1
        %s637 = scalar_lea.sflag [#allocation3], %s636
        %s638 = sand.u32 %s61, 1
        %s639 = smul.addr %s638, 8
        %s640 = scalar_lea.vmem [#allocation2], %s639
        %p641 = pneg %p74
        %p642 = pneg %p71
        %s643 = sand.u32 %s39, 1
        %s644 = scalar_lea.sflag [#allocation6], %s643
        %s645 = sand.u32 %s89, 1
        %s646 = smul.addr %s645, 8
        %s647 = scalar_lea.vmem [#allocation5], %s646
        %p648 = pneg %p102
        %p649 = pneg %p99
        %s650 = sand.u32 %s39, 1
        %s651 = scalar_lea.sflag [#allocation6], %s650
        %s652 = sand.u32 %s115, 1
        %s653 = smul.addr %s652, 16
        %s654 = scalar_lea.vmem [#allocation7], %s653
        %p655 = pneg %p128
        %p656 = pneg %p125
        %s657 = sand.u32 %s39, 1
        %s658 = scalar_lea.sflag [#allocation9], %s657
        %s659 = sand.u32 %s141, 1
        %s660 = smul.addr %s659, 16
        %s661 = scalar_lea.vmem [#allocation8], %s660
        %p662 = pneg %p154
        %p663 = pneg %p151
        %p664 = pneg %p175
        %p665 = pneg %p172
        %p666 = pneg %p196
        %p667 = pneg %p193
        %p668 = pneg %p217
        %p669 = pneg %p214
        %p670 = pneg %p238
        %p671 = pneg %p235
        %p672 = pneg %p259
        %p673 = pneg %p256
        %p674 = pneg %p280
        %p675 = pneg %p277
        %p676 = pneg %p301
        %p677 = pneg %p298
        %p678 = pneg %p322
        %p679 = pneg %p319
        %p680 = pneg %p343
        %p681 = pneg %p340
        %p682 = pneg %p364
        %p683 = pneg %p361
        %p684 = pneg %p392
        %p685 = pneg %p389
        %s686 = sand.u32 %s379, 1
        %s687 = scalar_lea.sflag [#allocation4], %s686
        %s688 = sand.u32 %s379, 1
        %s689 = smul.addr %s688, 8
        %s690 = scalar_lea.vmem [#allocation16], %s689
        %v691 = vld [vmem:[%s580] sm:$0xff]
        %v692 = vld [vmem:[%s600] sm:$0xff]
        %v693 = vld [vmem:[%s600 + $0x8] sm:$0xff]
        %v694 = vld [vmem:[%s590] sm:$0xff]
        %v695 = vadd.f32 %v691, %v694
        %v696 = vld [vmem:[%s610] sm:$0xff]
        %v697 = vld [vmem:[%s610 + $0x8] sm:$0xff]
        %v698 = vadd.f32 %v692, %v696
        %v699 = vadd.f32 %v693, %v697
        %v700 = vld [vmem:[#allocation10] sm:$0xff]
        %v701 = vld [vmem:[#allocation10 + $0x8] sm:$0xff]
        %v702 = vld [vmem:[#allocation10 + $0x10] sm:$0xff]
        %v703 = vld [vmem:[#allocation10 + $0x18] sm:$0xff]
        %v704 = vld [vmem:[#allocation10 + $0x20] sm:$0xff]
        %v705 = vld [vmem:[#allocation10 + $0x28] sm:$0xff]
        %v706 = vld [vmem:[#allocation10 + $0x30] sm:$0xff]
        %v707 = vld [vmem:[#allocation10 + $0x38] sm:$0xff]
        %v708 = vld [vmem:[#allocation10 + $0x40] sm:$0xff]
        %v709 = vld [vmem:[#allocation10 + $0x48] sm:$0xff]
        %v710 = vld [vmem:[#allocation10 + $0x50] sm:$0xff]
        %v711 = vld [vmem:[#allocation10 + $0x58] sm:$0xff]
        %v712 = vld [vmem:[#allocation10 + $0x60] sm:$0xff]
        %v713 = vld [vmem:[#allocation10 + $0x68] sm:$0xff]
        %v714 = vld [vmem:[#allocation10 + $0x70] sm:$0xff]
        %v715 = vld [vmem:[#allocation10 + $0x78] sm:$0xff]
        %v716 = vld [vmem:[%s8] sm:$0x1]
        %v718 = vperm.slane %v716, 0
        %720 = vmatpush.msra.mxu0 %v715
        %721 = vmatpush.msra.mxu0 %v714
        %722 = vmatpush.msra.mxu0 %v713
        %723 = vmatpush.msra.mxu0 %v712
        %724 = vmatpush.msra.mxu0 %v711
        %725 = vmatpush.msra.mxu0 %v710
        %726 = vmatpush.msra.mxu0 %v709
        %727 = vmatpush.msra.mxu0 %v708
        %728 = vmatpush.msra.mxu0 %v707
        %729 = vmatpush.msra.mxu0 %v706
        %730 = vmatpush.msra.mxu0 %v705
        %731 = vmatpush.msra.mxu0 %v704
        %732 = vmatpush.msra.mxu0 %v703
        %733 = vmatpush.msra.mxu0 %v702
        %734 = vmatpush.msra.mxu0 %v701
        %735 = vmatpush.msra.mxu0 %v700
        %736 = vmatmul.f32.gmra.mxu0 %v695
        %v737 = vpop.f32.mrf.mxu0
        %v738 = vadd.f32 %v718, %v737
        %739 = vdwg.mxu0
        %v740 = vld [vmem:[#allocation11] sm:$0xff]
        %v741 = vld [vmem:[#allocation11 + $0x8] sm:$0xff]
        %v742 = vld [vmem:[#allocation11 + $0x10] sm:$0xff]
        %v743 = vld [vmem:[#allocation11 + $0x18] sm:$0xff]
        %v744 = vld [vmem:[#allocation11 + $0x20] sm:$0xff]
        %v745 = vld [vmem:[#allocation11 + $0x28] sm:$0xff]
        %v746 = vld [vmem:[#allocation11 + $0x30] sm:$0xff]
        %v747 = vld [vmem:[#allocation11 + $0x38] sm:$0xff]
        %v748 = vld [vmem:[#allocation11 + $0x40] sm:$0xff]
        %v749 = vld [vmem:[#allocation11 + $0x48] sm:$0xff]
        %v750 = vld [vmem:[#allocation11 + $0x50] sm:$0xff]
        %v751 = vld [vmem:[#allocation11 + $0x58] sm:$0xff]
        %v752 = vld [vmem:[#allocation11 + $0x60] sm:$0xff]
        %v753 = vld [vmem:[#allocation11 + $0x68] sm:$0xff]
        %v754 = vld [vmem:[#allocation11 + $0x70] sm:$0xff]
        %v755 = vld [vmem:[#allocation11 + $0x78] sm:$0xff]
        %v756 = vld [vmem:[%s9] sm:$0x1]
        %v758 = vperm.slane %v756, 0
        %760 = vmatpush.msra.mxu0 %v755
        %761 = vmatpush.msra.mxu0 %v754
        %762 = vmatpush.msra.mxu0 %v753
        %763 = vmatpush.msra.mxu0 %v752
        %764 = vmatpush.msra.mxu0 %v751
        %765 = vmatpush.msra.mxu0 %v750
        %766 = vmatpush.msra.mxu0 %v749
        %767 = vmatpush.msra.mxu0 %v748
        %768 = vmatpush.msra.mxu0 %v747
        %769 = vmatpush.msra.mxu0 %v746
        %770 = vmatpush.msra.mxu0 %v745
        %771 = vmatpush.msra.mxu0 %v744
        %772 = vmatpush.msra.mxu0 %v743
        %773 = vmatpush.msra.mxu0 %v742
        %774 = vmatpush.msra.mxu0 %v741
        %775 = vmatpush.msra.mxu0 %v740
        %776 = vmatmul.f32.gmra.mxu0 %v698
        %v777 = vpop.f32.mrf.mxu0
        %v778 = vadd.f32 %v758, %v777
        %779 = vmatmul.f32.gmra.mxu0 %v699
        %v780 = vpop.f32.mrf.mxu0
        %v781 = vadd.f32 %v758, %v780
        %782 = vdwg.mxu0
        %v783 = vld [vmem:[#allocation13] sm:$0xff]
        %v784 = vld [vmem:[#allocation13 + $0x8] sm:$0xff]
        %v785 = vld [vmem:[#allocation13 + $0x10] sm:$0xff]
        %v786 = vld [vmem:[#allocation13 + $0x18] sm:$0xff]
        %v787 = vld [vmem:[#allocation13 + $0x20] sm:$0xff]
        %v788 = vld [vmem:[#allocation13 + $0x28] sm:$0xff]
        %v789 = vld [vmem:[#allocation13 + $0x30] sm:$0xff]
        %v790 = vld [vmem:[#allocation13 + $0x38] sm:$0xff]
        %v791 = vld [vmem:[#allocation13 + $0x40] sm:$0xff]
        %v792 = vld [vmem:[#allocation13 + $0x48] sm:$0xff]
        %v793 = vld [vmem:[#allocation13 + $0x50] sm:$0xff]
        %v794 = vld [vmem:[#allocation13 + $0x58] sm:$0xff]
        %v795 = vld [vmem:[#allocation13 + $0x60] sm:$0xff]
        %v796 = vld [vmem:[#allocation13 + $0x68] sm:$0xff]
        %v797 = vld [vmem:[#allocation13 + $0x70] sm:$0xff]
        %v798 = vld [vmem:[#allocation13 + $0x78] sm:$0xff]
        %v799 = vld [vmem:[%s10] sm:$0x1]
        %v801 = vperm.slane %v799, 0
        %803 = vmatpush.msra.mxu0 %v798
        %804 = vmatpush.msra.mxu0 %v797
        %805 = vmatpush.msra.mxu0 %v796
        %806 = vmatpush.msra.mxu0 %v795
        %807 = vmatpush.msra.mxu0 %v794
        %808 = vmatpush.msra.mxu0 %v793
        %809 = vmatpush.msra.mxu0 %v792
        %810 = vmatpush.msra.mxu0 %v791
        %811 = vmatpush.msra.mxu0 %v790
        %812 = vmatpush.msra.mxu0 %v789
        %813 = vmatpush.msra.mxu0 %v788
        %814 = vmatpush.msra.mxu0 %v787
        %815 = vmatpush.msra.mxu0 %v786
        %816 = vmatpush.msra.mxu0 %v785
        %817 = vmatpush.msra.mxu0 %v784
        %818 = vmatpush.msra.mxu0 %v783
        %819 = vmatmul.f32.gmra.mxu0 %v692
        %v820 = vpop.f32.mrf.mxu0
        %v821 = vadd.f32 %v801, %v820
        %822 = vmatmul.f32.gmra.mxu0 %v693
        %v823 = vpop.f32.mrf.mxu0
        %v824 = vadd.f32 %v801, %v823
        %825 = vdwg.mxu0
        %v826 = vld [vmem:[#allocation14] sm:$0xff]
        %v827 = vld [vmem:[#allocation14 + $0x8] sm:$0xff]
        %v828 = vld [vmem:[#allocation14 + $0x10] sm:$0xff]
        %v829 = vld [vmem:[#allocation14 + $0x18] sm:$0xff]
        %vm830 = vcmask 64512
        %v832 = vsel %vm830, %v738, 0
        %v835 = vsel %vm830, %v778, 0
        %v838 = vsel %vm830, %v781, 0
        %840 = vmatpush.xpose.msra.mxu0 0.0
        %841 = vmatpush.xpose.msra.mxu0 0.0
        %842 = vmatpush.xpose.msra.mxu0 0.0
        %843 = vmatpush.xpose.msra.mxu0 0.0
        %844 = vmatpush.xpose.msra.mxu0 0.0
        %845 = vmatpush.xpose.msra.mxu0 0.0
        %846 = vmatpush.xpose.msra.mxu0 0.0
        %847 = vmatpush.xpose.msra.mxu0 0.0
        %848 = vmatpush.xpose.msra.mxu0 0.0
        %849 = vmatpush.xpose.msra.mxu0 0.0
        %850 = vmatpush.xpose.msra.mxu0 0.0
        %851 = vmatpush.xpose.msra.mxu0 0.0
        %852 = vmatpush.xpose.msra.mxu0 0.0
        %853 = vmatpush.xpose.msra.mxu0 0.0
        %854 = vmatpush.xpose.msra.mxu0 %v838
        %855 = vmatpush.xpose.msra.mxu0 %v835
        %856 = vmatmul.f32.gmra.mxu0 %v832
        %v857 = vpop.f32.mrf.mxu0
        %v858 = vadd.f32 0.0, %v857
        %859 = vdwg.mxu0
        %vm860 = vcmask 130048
        %v861 = vsel %vm860, %v858, -inf
        %862 = vmax.xlane.f32.xlu0 %v861
        %v863 = vpop.xlane.xlu0 %862
        %v864 = vsub.f32 %v858, %v863
        %v865 = vmul.f32 %v864, 1.442695
        %v866 = vpow.pop %v865
        %v867 = vsel %vm860, %v866, 0.0
        %868 = vadd.xlane.f32.xlu0 %v867
        %v869 = vpop.xlane.xlu0 %868
        %v871 = vsel %vm860, %v866, 0
        %873 = vmatpush.msra.mxu0 0.0
        %874 = vmatpush.msra.mxu0 0.0
        %875 = vmatpush.msra.mxu0 0.0
        %876 = vmatpush.msra.mxu0 0.0
        %877 = vmatpush.msra.mxu0 0.0
        %878 = vmatpush.msra.mxu0 0.0
        %879 = vmatpush.msra.mxu0 0.0
        %880 = vmatpush.msra.mxu0 0.0
        %881 = vmatpush.msra.mxu0 0.0
        %882 = vmatpush.msra.mxu0 0.0
        %883 = vmatpush.msra.mxu0 0.0
        %884 = vmatpush.msra.mxu0 0.0
        %885 = vmatpush.msra.mxu0 0.0
        %886 = vmatpush.msra.mxu0 0.0
        %887 = vmatpush.msra.mxu0 %v824
        %888 = vmatpush.msra.mxu0 %v821
        %889 = vmatmul.f32.gmra.mxu0 %v871
        %v890 = vpop.f32.mrf.mxu0
        %v891 = vadd.f32 0.0, %v890
        %892 = vdwg.mxu0
        %v893 = vrcp.pop %v869
        %v894 = vmul.f32 %v891, %v893
        %895 = vrot.lane.b32.xlu0 %v738, 120
        %v896 = vpop.permute.xlu0 %895
        %897 = vrot.lane.b32.xlu0 %v778, 120
        %v898 = vpop.permute.xlu0 %897
        %899 = vrot.lane.b32.xlu0 %v781, 120
        %v900 = vpop.permute.xlu0 %899
        %v901 = vsel %vm830, %v896, 0
        %v903 = vsel %vm830, %v898, 0
        %v905 = vsel %vm830, %v900, 0
        %907 = vmatpush.xpose.msra.mxu0 0.0
        %908 = vmatpush.xpose.msra.mxu0 0.0
        %909 = vmatpush.xpose.msra.mxu0 0.0
        %910 = vmatpush.xpose.msra.mxu0 0.0
        %911 = vmatpush.xpose.msra.mxu0 0.0
        %912 = vmatpush.xpose.msra.mxu0 0.0
        %913 = vmatpush.xpose.msra.mxu0 0.0
        %914 = vmatpush.xpose.msra.mxu0 0.0
        %915 = vmatpush.xpose.msra.mxu0 0.0
        %916 = vmatpush.xpose.msra.mxu0 0.0
        %917 = vmatpush.xpose.msra.mxu0 0.0
        %918 = vmatpush.xpose.msra.mxu0 0.0
        %919 = vmatpush.xpose.msra.mxu0 0.0
        %920 = vmatpush.xpose.msra.mxu0 0.0
        %921 = vmatpush.xpose.msra.mxu0 %v905
        %922 = vmatpush.xpose.msra.mxu0 %v903
        %923 = vmatmul.f32.gmra.mxu0 %v901
        %v924 = vpop.f32.mrf.mxu0
        %v925 = vadd.f32 0.0, %v924
        %926 = vdwg.mxu0
        %v927 = vsel %vm860, %v925, -inf
        %928 = vmax.xlane.f32.xlu0 %v927
        %v929 = vpop.xlane.xlu0 %928
        %v930 = vsub.f32 %v925, %v929
        %v931 = vmul.f32 %v930, 1.442695
        %v932 = vpow.pop %v931
        %v933 = vsel %vm860, %v932, 0.0
        %934 = vadd.xlane.f32.xlu0 %v933
        %v935 = vpop.xlane.xlu0 %934
        %938 = vrot.lane.b32.xlu0 %v821, 120
        %v939 = vpop.permute.xlu0 %938
        %940 = vrot.lane.b32.xlu0 %v824, 120
        %v941 = vpop.permute.xlu0 %940
        %v945 = vsel %vm860, %v932, 0
        %947 = vmatpush.msra.mxu0 0.0
        %948 = vmatpush.msra.mxu0 0.0
        %949 = vmatpush.msra.mxu0 0.0
        %950 = vmatpush.msra.mxu0 0.0
        %951 = vmatpush.msra.mxu0 0.0
        %952 = vmatpush.msra.mxu0 0.0
        %953 = vmatpush.msra.mxu0 0.0
        %954 = vmatpush.msra.mxu0 0.0
        %955 = vmatpush.msra.mxu0 0.0
        %956 = vmatpush.msra.mxu0 0.0
        %957 = vmatpush.msra.mxu0 0.0
        %958 = vmatpush.msra.mxu0 0.0
        %959 = vmatpush.msra.mxu0 0.0
        %960 = vmatpush.msra.mxu0 0.0
        %961 = vmatpush.msra.mxu0 %v941
        %962 = vmatpush.msra.mxu0 %v939
        %963 = vmatmul.f32.gmra.mxu0 %v945
        %v964 = vpop.f32.mrf.mxu0
        %v965 = vadd.f32 0.0, %v964
        %966 = vdwg.mxu0
        %v967 = vrcp.pop %v935
        %v968 = vmul.f32 %v965, %v967
        %v970 = vsel %vm830, %v968, 0
        %972 = vmatpush.msra.mxu0 0.0
        %973 = vmatpush.msra.mxu0 0.0
        %974 = vmatpush.msra.mxu0 0.0
        %975 = vmatpush.msra.mxu0 0.0
        %976 = vmatpush.msra.mxu0 0.0
        %977 = vmatpush.msra.mxu0 0.0
        %978 = vmatpush.msra.mxu0 0.0
        %979 = vmatpush.msra.mxu0 0.0
        %980 = vmatpush.msra.mxu0 0.0
        %981 = vmatpush.msra.mxu0 0.0
        %982 = vmatpush.msra.mxu0 0.0
        %983 = vmatpush.msra.mxu0 0.0
        %984 = vmatpush.msra.mxu0 0.0
        %985 = vmatpush.msra.mxu0 0.0
        %986 = vmatpush.msra.mxu0 0.0
        %987 = vmatpush.msra.mxu0 %v827
        %988 = vmatmul.f32.gmra.mxu0 %v970
        %v989 = vpop.f32.mrf.mxu0
        %v990 = vadd.f32 0.0, %v989
        %991 = vdwg.mxu0
        %v993 = vsel %vm830, %v894, 0
        %995 = vmatpush.msra.mxu0 0.0
        %996 = vmatpush.msra.mxu0 0.0
        %997 = vmatpush.msra.mxu0 0.0
        %998 = vmatpush.msra.mxu0 0.0
        %999 = vmatpush.msra.mxu0 0.0
        %1000 = vmatpush.msra.mxu0 0.0
        %1001 = vmatpush.msra.mxu0 0.0
        %1002 = vmatpush.msra.mxu0 0.0
        %1003 = vmatpush.msra.mxu0 0.0
        %1004 = vmatpush.msra.mxu0 0.0
        %1005 = vmatpush.msra.mxu0 0.0
        %1006 = vmatpush.msra.mxu0 0.0
        %1007 = vmatpush.msra.mxu0 0.0
        %1008 = vmatpush.msra.mxu0 0.0
        %1009 = vmatpush.msra.mxu0 0.0
        %1010 = vmatpush.msra.mxu0 %v826
        %1011 = vmatmul.f32.gmra.mxu0 %v993
        %v1012 = vpop.f32.mrf.mxu0
        %v1013 = vadd.f32 %v990, %v1012
        %1014 = vdwg.mxu0
        %1015 = vrot.lane.b32.xlu0 %v738, 112
        %v1016 = vpop.permute.xlu0 %1015
        %1017 = vrot.lane.b32.xlu0 %v778, 112
        %v1018 = vpop.permute.xlu0 %1017
        %1019 = vrot.lane.b32.xlu0 %v781, 112
        %v1020 = vpop.permute.xlu0 %1019
        %v1021 = vsel %vm830, %v1016, 0
        %v1023 = vsel %vm830, %v1018, 0
        %v1025 = vsel %vm830, %v1020, 0
        %1027 = vmatpush.xpose.msra.mxu0 0.0
        %1028 = vmatpush.xpose.msra.mxu0 0.0
        %1029 = vmatpush.xpose.msra.mxu0 0.0
        %1030 = vmatpush.xpose.msra.mxu0 0.0
        %1031 = vmatpush.xpose.msra.mxu0 0.0
        %1032 = vmatpush.xpose.msra.mxu0 0.0
        %1033 = vmatpush.xpose.msra.mxu0 0.0
        %1034 = vmatpush.xpose.msra.mxu0 0.0
        %1035 = vmatpush.xpose.msra.mxu0 0.0
        %1036 = vmatpush.xpose.msra.mxu0 0.0
        %1037 = vmatpush.xpose.msra.mxu0 0.0
        %1038 = vmatpush.xpose.msra.mxu0 0.0
        %1039 = vmatpush.xpose.msra.mxu0 0.0
        %1040 = vmatpush.xpose.msra.mxu0 0.0
        %1041 = vmatpush.xpose.msra.mxu0 %v1025
        %1042 = vmatpush.xpose.msra.mxu0 %v1023
        %1043 = vmatmul.f32.gmra.mxu0 %v1021
        %v1044 = vpop.f32.mrf.mxu0
        %v1045 = vadd.f32 0.0, %v1044
        %1046 = vdwg.mxu0
        %v1047 = vsel %vm860, %v1045, -inf
        %1048 = vmax.xlane.f32.xlu0 %v1047
        %v1049 = vpop.xlane.xlu0 %1048
        %v1050 = vsub.f32 %v1045, %v1049
        %v1051 = vmul.f32 %v1050, 1.442695
        %v1052 = vpow.pop %v1051
        %v1053 = vsel %vm860, %v1052, 0.0
        %1054 = vadd.xlane.f32.xlu0 %v1053
        %v1055 = vpop.xlane.xlu0 %1054
        %1056 = vrot.lane.b32.xlu0 %v821, 112
        %v1057 = vpop.permute.xlu0 %1056
        %1058 = vrot.lane.b32.xlu0 %v824, 112
        %v1059 = vpop.permute.xlu0 %1058
        %v1063 = vsel %vm860, %v1052, 0
        %1065 = vmatpush.msra.mxu0 0.0
        %1066 = vmatpush.msra.mxu0 0.0
        %1067 = vmatpush.msra.mxu0 0.0
        %1068 = vmatpush.msra.mxu0 0.0
        %1069 = vmatpush.msra.mxu0 0.0
        %1070 = vmatpush.msra.mxu0 0.0
        %1071 = vmatpush.msra.mxu0 0.0
        %1072 = vmatpush.msra.mxu0 0.0
        %1073 = vmatpush.msra.mxu0 0.0
        %1074 = vmatpush.msra.mxu0 0.0
        %1075 = vmatpush.msra.mxu0 0.0
        %1076 = vmatpush.msra.mxu0 0.0
        %1077 = vmatpush.msra.mxu0 0.0
        %1078 = vmatpush.msra.mxu0 0.0
        %1079 = vmatpush.msra.mxu0 %v1059
        %1080 = vmatpush.msra.mxu0 %v1057
        %1081 = vmatmul.f32.gmra.mxu0 %v1063
        %v1082 = vpop.f32.mrf.mxu0
        %v1083 = vadd.f32 0.0, %v1082
        %1084 = vdwg.mxu0
        %v1085 = vrcp.pop %v1055
        %v1086 = vmul.f32 %v1083, %v1085
        %v1088 = vsel %vm830, %v1086, 0
        %1090 = vmatpush.msra.mxu0 0.0
        %1091 = vmatpush.msra.mxu0 0.0
        %1092 = vmatpush.msra.mxu0 0.0
        %1093 = vmatpush.msra.mxu0 0.0
        %1094 = vmatpush.msra.mxu0 0.0
        %1095 = vmatpush.msra.mxu0 0.0
        %1096 = vmatpush.msra.mxu0 0.0
        %1097 = vmatpush.msra.mxu0 0.0
        %1098 = vmatpush.msra.mxu0 0.0
        %1099 = vmatpush.msra.mxu0 0.0
        %1100 = vmatpush.msra.mxu0 0.0
        %1101 = vmatpush.msra.mxu0 0.0
        %1102 = vmatpush.msra.mxu0 0.0
        %1103 = vmatpush.msra.mxu0 0.0
        %1104 = vmatpush.msra.mxu0 0.0
        %1105 = vmatpush.msra.mxu0 %v828
        %1106 = vmatmul.f32.gmra.mxu0 %v1088
        %v1107 = vpop.f32.mrf.mxu0
        %v1108 = vadd.f32 0.0, %v1107
        %1109 = vdwg.mxu0
        %v1110 = vadd.f32 %v1013, %v1108
        %1111 = vrot.lane.b32.xlu0 %v738, 104
        %v1112 = vpop.permute.xlu0 %1111
        %1113 = vrot.lane.b32.xlu0 %v778, 104
        %v1114 = vpop.permute.xlu0 %1113
        %1115 = vrot.lane.b32.xlu0 %v781, 104
        %v1116 = vpop.permute.xlu0 %1115
        %v1117 = vsel %vm830, %v1112, 0
        %v1119 = vsel %vm830, %v1114, 0
        %v1121 = vsel %vm830, %v1116, 0
        %1123 = vmatpush.xpose.msra.mxu0 0.0
        %1124 = vmatpush.xpose.msra.mxu0 0.0
        %1125 = vmatpush.xpose.msra.mxu0 0.0
        %1126 = vmatpush.xpose.msra.mxu0 0.0
        %1127 = vmatpush.xpose.msra.mxu0 0.0
        %1128 = vmatpush.xpose.msra.mxu0 0.0
        %1129 = vmatpush.xpose.msra.mxu0 0.0
        %1130 = vmatpush.xpose.msra.mxu0 0.0
        %1131 = vmatpush.xpose.msra.mxu0 0.0
        %1132 = vmatpush.xpose.msra.mxu0 0.0
        %1133 = vmatpush.xpose.msra.mxu0 0.0
        %1134 = vmatpush.xpose.msra.mxu0 0.0
        %1135 = vmatpush.xpose.msra.mxu0 0.0
        %1136 = vmatpush.xpose.msra.mxu0 0.0
        %1137 = vmatpush.xpose.msra.mxu0 %v1121
        %1138 = vmatpush.xpose.msra.mxu0 %v1119
        %1139 = vmatmul.f32.gmra.mxu0 %v1117
        %v1140 = vpop.f32.mrf.mxu0
        %v1141 = vadd.f32 0.0, %v1140
        %1142 = vdwg.mxu0
        %v1143 = vsel %vm860, %v1141, -inf
        %1144 = vmax.xlane.f32.xlu0 %v1143
        %v1145 = vpop.xlane.xlu0 %1144
        %v1146 = vsub.f32 %v1141, %v1145
        %v1147 = vmul.f32 %v1146, 1.442695
        %v1148 = vpow.pop %v1147
        %v1149 = vsel %vm860, %v1148, 0.0
        %1150 = vadd.xlane.f32.xlu0 %v1149
        %v1151 = vpop.xlane.xlu0 %1150
        %1152 = vrot.lane.b32.xlu0 %v821, 104
        %v1153 = vpop.permute.xlu0 %1152
        %1154 = vrot.lane.b32.xlu0 %v824, 104
        %v1155 = vpop.permute.xlu0 %1154
        %v1159 = vsel %vm860, %v1148, 0
        %1161 = vmatpush.msra.mxu0 0.0
        %1162 = vmatpush.msra.mxu0 0.0
        %1163 = vmatpush.msra.mxu0 0.0
        %1164 = vmatpush.msra.mxu0 0.0
        %1165 = vmatpush.msra.mxu0 0.0
        %1166 = vmatpush.msra.mxu0 0.0
        %1167 = vmatpush.msra.mxu0 0.0
        %1168 = vmatpush.msra.mxu0 0.0
        %1169 = vmatpush.msra.mxu0 0.0
        %1170 = vmatpush.msra.mxu0 0.0
        %1171 = vmatpush.msra.mxu0 0.0
        %1172 = vmatpush.msra.mxu0 0.0
        %1173 = vmatpush.msra.mxu0 0.0
        %1174 = vmatpush.msra.mxu0 0.0
        %1175 = vmatpush.msra.mxu0 %v1155
        %1176 = vmatpush.msra.mxu0 %v1153
        %1177 = vmatmul.f32.gmra.mxu0 %v1159
        %v1178 = vpop.f32.mrf.mxu0
        %v1179 = vadd.f32 0.0, %v1178
        %1180 = vdwg.mxu0
        %v1181 = vrcp.pop %v1151
        %v1182 = vmul.f32 %v1179, %v1181
        %v1184 = vsel %vm830, %v1182, 0
        %1186 = vmatpush.msra.mxu0 0.0
        %1187 = vmatpush.msra.mxu0 0.0
        %1188 = vmatpush.msra.mxu0 0.0
        %1189 = vmatpush.msra.mxu0 0.0
        %1190 = vmatpush.msra.mxu0 0.0
        %1191 = vmatpush.msra.mxu0 0.0
        %1192 = vmatpush.msra.mxu0 0.0
        %1193 = vmatpush.msra.mxu0 0.0
        %1194 = vmatpush.msra.mxu0 0.0
        %1195 = vmatpush.msra.mxu0 0.0
        %1196 = vmatpush.msra.mxu0 0.0
        %1197 = vmatpush.msra.mxu0 0.0
        %1198 = vmatpush.msra.mxu0 0.0
        %1199 = vmatpush.msra.mxu0 0.0
        %1200 = vmatpush.msra.mxu0 0.0
        %1201 = vmatpush.msra.mxu0 %v829
        %1202 = vmatmul.f32.gmra.mxu0 %v1184
        %v1203 = vpop.f32.mrf.mxu0
        %v1204 = vadd.f32 0.0, %v1203
        %1205 = vdwg.mxu0
        %v1206 = vadd.f32 %v1110, %v1204
        %v1207 = vadd.f32 %v691, %v1206
        %v1208 = vld [vmem:[%s11] sm:$0x1]
        %v1210 = vperm.slane %v1208, 0
        %v1212 = vadd.f32 %v1207, %v1210
        %v1213 = vlaneseq
        %v1214 = vand.u32 %v1213, 127
        %vm1215 = vcmp.lt.s32.totalorder %v1214, 32
        %1216 = vadd.xlane.f32.xlu0 %v1212
        %v1217 = vpop.xlane.xlu0 %1216
        %v1218 = vmul.f32 %v1217, 0.03125
        %v1219 = vsub.f32 %v1212, %v1218
        %v1220 = vsel %vm1215, 1, 0
        %vm1221 = vcmp.eq.s32.totalorder %v1220, 1
        %v1222 = vsel %vm1221, %v1219, 0.0
        %v1223 = vmul.f32 %v1222, %v1222
        %1224 = vadd.xlane.f32.xlu0 %v1223
        %v1225 = vpop.xlane.xlu0 %1224
        %v1226 = vmul.f32 %v1225, 0.03125
        %v1227 = vadd.f32 %v1226, 1e-05
        %v1228 = vrsqrt.pop %v1227
        %v1229 = vmul.f32 %v1228, %v1227
        %v1230 = vmul.f32 %v1229, %v1228
        %v1231 = vmul.f32 0.5, %v1230
        %v1232 = vsub.f32 1.5, %v1231
        %v1233 = vmul.f32 %v1228, %v1232
        %vm1234 = vweird.f32 %v1227
        %vm1235 = vweird.f32 %v1228
        %vm1236 = vmor %vm1234, %vm1235
        %v1237 = vsel %vm1236, %v1228, %v1233
        %v1238 = vmul.f32 %v1222, %v1237
        %v1239 = vld [vmem:[%s12] sm:$0x1]
        %v1241 = vperm.slane %v1239, 0
        %v1243 = vmul.f32 %v1238, %v1241
        %v1244 = vld [vmem:[%s13] sm:$0x1]
        %v1246 = vperm.slane %v1244, 0
        %v1248 = vadd.f32 %v1243, %v1246
        %1249 = vst [vmem:[%s690] sm:$0xff] %v1248
        %s1250 = sand.u32 %s379, 1
        %s1251 = scalar_lea.sflag [#allocation4], %s1250
        %s1252 = sand.u32 %s379, 1
        %s1253 = smul.addr %s1252, 8
        %s1254 = scalar_lea.vmem [#allocation16], %s1253
        // Predicated region
        $region109: #{tpu_custom_call.1} parent=75 // pred_check
          %p1255 = pneg %p389
        $region110: #{tpu_custom_call.1} parent=75 // pred_check_branch
          %1257 = sbr.rel (%p1255) target = $region112
        $region111: #{tpu_custom_call.1} parent=75 // pred_region
          %1259 = vsyncadd %s1251, 0
          %s1260 = sadd.s32 %s44, %s43
          %s1261 = smul.addr %s1260, 8
          %s1262 = scalar_lea.hbm %s14, %s1261
          %s1264 = sshll.u32 %s1254, 4
          %s1265 = int_to_ptr.vmem [resolvable:$true] %s1264
          %s1266 = sshll.u32 %s1262, 4
          %s1267 = int_to_ptr.hbm [resolvable:$true] %s1266
          %1269 = dma.vmem_to_hbm [thread:$0]  %s1265, 128, %s1267, %s1251
        $region112: #{tpu_custom_call.1} parent=75 // pred_fallthru
          _
      $region76: #{tpu_custom_call.1} parent=5 // pred_fallthru
        _
      %p1270 = scmp.le.s32.totalorder 2, %s34
      // Predicated region
      $region113: #{tpu_custom_call.1} parent=5 // pred_check
        %p1271 = pneg %p1270
      $region114: #{tpu_custom_call.1} parent=5 // pred_check_branch
        %1273 = sbr.rel (%p1271) target = $region116
      $region115: #{tpu_custom_call.1} parent=5 // pred_region
        %s1274 = ssub.s32 %s34, 2
        // Predicated region
        $region117: #{tpu_custom_call.1} parent=115 // pred_check
          %p1275 = pneg %p395
        $region118: #{tpu_custom_call.1} parent=115 // pred_check_branch
          %1277 = sbr.rel (%p1275) target = $region120
        $region119: #{tpu_custom_call.1} parent=115 // pred_region
          %s1278 = sand.u32 %s380, 1
          %s1279 = scalar_lea.sflag [#allocation4], %s1278
          %s1280 = sand.u32 %s380, 1
          %s1281 = smul.addr %s1280, 8
          %s1282 = scalar_lea.vmem [#allocation16], %s1281
          %1284 = dma.done %s1279, 128
        $region120: #{tpu_custom_call.1} parent=115 // pred_fallthru
          _
      $region116: #{tpu_custom_call.1} parent=5 // pred_fallthru
        _
    $region6: #{tpu_custom_call.1} parent=1 // loop_footer
      %s38 = sadd.s32 1, %s34
    $region7: #{tpu_custom_call.1} parent=1 // loop_footer_branch
      %33 = sbr.rel target = $region3
    $region8: #{tpu_custom_call.1} parent=1 // loop_exit
      _
    %1285 = vsyncpa [#allocation3], 1
    %s1286 = scalar_lea.sflag [#allocation3], 1
    %1287 = vsyncpa %s1286, 1
    %1288 = vsyncpa [#allocation6], 1
    %s1289 = scalar_lea.sflag [#allocation6], 1
    %1290 = vsyncpa %s1289, 1
    %1291 = vsyncpa [#allocation9], 1
    %s1292 = scalar_lea.sflag [#allocation9], 1
    %1293 = vsyncpa %s1292, 1
    %1294 = vsyncpa [#allocation12], 1
    %1295 = vsyncpa [#allocation15], 1
    %1296 = vsyncpa [#allocation4], 1
    %s1297 = scalar_lea.sflag [#allocation4], 1
    %1298 = vsyncpa %s1297, 1

</llo_original>
